<compile_context>
chip_gen: v5e
topology: v5e:2x2
jax: 0.10.0
libtpu: 0.0.40
codegen_flags: <defaults>
</compile_context>

<pallas_src>
import functools

import jax
import jax.numpy as jnp
from jax import lax
from jax.experimental import pallas as pl
from jax.experimental.pallas import tpu as pltpu


def _round_up(x, m):
    return (x + m - 1) // m * m


def _pad_bytes(shape, itemsize):
    """Lane/sublane-padded VMEM footprint of one buffer."""
    shape = tuple(int(d) for d in shape)
    if len(shape) < 2:
        shape = (1,) * (2 - len(shape)) + shape
    lead = 1
    for d in shape[:-2]:
        lead *= d
    return lead * _round_up(shape[-2], 8) * _round_up(shape[-1], 128) * itemsize


def _dfm_tail(embs, emb_slab, lin_term, w0_ref, b0_ref, w1_ref, b1_ref,
              w2_ref, bias_val, out_ref):
    """FM + MLP + sigmoid from per-field embeddings and the flat [tb, F*E] slab."""
    # ---- FeaturesCross (FM, reduce_sum): 0.5*sum_e((sum_f v)^2 - sum_f v^2) --
    sum_f = sum(embs)
    sum_sq = sum(e * e for e in embs)
    fm_term = 0.5 * jnp.sum(sum_f * sum_f - sum_sq, axis=1, keepdims=True)

    # ---- MLP: single fused K=F*E layer-0 dot; BN folded; Dropout=identity. ---
    h = jnp.dot(emb_slab.astype(w0_ref.dtype), w0_ref[...],
                preferred_element_type=jnp.float32)
    h = jnp.maximum(h + b0_ref[...], 0.0)
    h = jnp.dot(h.astype(w1_ref.dtype), w1_ref[...],
                preferred_element_type=jnp.float32) + b1_ref[...]
    h = jnp.maximum(h, 0.0)
    mlp_term = jnp.sum(h * w2_ref[...], axis=1, keepdims=True)   # N=1 dot on VPU

    total = lin_term + fm_term + mlp_term + bias_val             # [tb, 1]
    # Lane-dense store: [tb, 1] -> [1, 1, tb].
    out_ref[...] = jnp.transpose(jax.nn.sigmoid(total))[None, :, :]


def _deepfm_onehot_kernel(x_ref, emb_ref, w0_ref, b0_ref, w1_ref, b1_ref,
                          w2_ref, bias_ref, out_ref, *, num_fields, embed_dim):
    """Small-vocab path: one-hot MXU gather from a VMEM-resident table."""
    F, E = num_fields, embed_dim
    tb = x_ref.shape[0]
    vpad = emb_ref.shape[0]

    x_tile = x_ref[...]                                           # [tb, F] int32
    lane_ids = lax.broadcasted_iota(jnp.int32, (tb, vpad), 1)
    table = emb_ref[...]                                          # [vpad, E+1] f32

    gathered = []
    for f in range(F):                                            # F small, static
        onehot = (x_tile[:, f:f + 1] == lane_ids).astype(jnp.float32)
        gathered.append(jnp.dot(onehot, table,
                                preferred_element_type=jnp.float32))  # [tb, E+1]

    embs = [g[:, :E] for g in gathered]
    lin_term = sum(g[:, E:E + 1] for g in gathered)               # FeaturesLinear
    emb_slab = jnp.concatenate(embs, axis=1)                      # [tb, F*E]
    _dfm_tail(embs, emb_slab, lin_term, w0_ref, b0_ref, w1_ref, b1_ref,
              w2_ref, bias_ref[0], out_ref)


def _deepfm_pregathered_kernel(slab_ref, w0_ref, b0_ref, w1_ref, b1_ref,
                               w2_ref, bias_ref, out_ref, *, num_fields, embed_dim):
    """Large-vocab path: table stays in HBM; XLA pre-gathers a [tb, F*E+F] slab."""
    F, E = num_fields, embed_dim
    slab = slab_ref[...]                                          # [tb, F*E + F]
    emb_slab = slab[:, :F * E]                                    # contiguous MLP input
    embs = [emb_slab[:, f * E:(f + 1) * E] for f in range(F)]
    lin_term = jnp.sum(slab[:, F * E:], axis=1, keepdims=True)    # FeaturesLinear
    _dfm_tail(embs, emb_slab, lin_term, w0_ref, b0_ref, w1_ref, b1_ref,
              w2_ref, bias_ref[0], out_ref)


def deepfm_forward(x, params, *, num_fields, embed_dim, tb=None,
                   use_onehot=None, onehot_vocab_max=2048):
    batch = x.shape[0]
    F, E = num_fields, embed_dim

    if tb is None:
        # tb=256 keeps >=2 grid steps once batch >= 512 so the "parallel" grid
        # axis can shard across v7x's two TensorCores; per-step overhead
        # (~0.35us) is negligible on single-TC v5e/v6e.
        tb = min(256, _round_up(max(batch, 1), 128))
    b_pad = _round_up(batch, tb)
    nb = b_pad // tb

    vocab = params["emb"].shape[0]
    if use_onehot is None:
        use_onehot = vocab <= onehot_vocab_max

    # Padded batch rows gather row 0 and are sliced off afterwards.
    x_pad = jnp.zeros((b_pad, F), jnp.int32).at[:batch].set(x.astype(jnp.int32))

    # Fold eval-mode BatchNorm into the MLP weights; bf16 weights, f32 accum.
    w0 = (params["w0"] * params["s0"]).astype(jnp.bfloat16)          # [F*E, H0]
    b0 = (params["b0"] * params["s0"] + params["sh0"]).astype(jnp.float32)
    w1 = (params["w1"] * params["s1"]).astype(jnp.bfloat16)          # [H0, H1]
    b1 = (params["b1"] * params["s1"] + params["sh1"]).astype(jnp.float32)
    w2_row = params["w2"].reshape(1, -1).astype(jnp.float32)         # [1, H1]
    bias = (params["lin_b"] + params["b2"]).reshape(-1).astype(jnp.float32)  # (1,)
    h0, h1 = w0.shape[1], w1.shape[1]

    def resident(shape):   # weights: same block every grid step -> stay in VMEM
        n = len(shape)
        return pl.BlockSpec(shape, lambda i, _n=n: (0,) * _n)

    weight_specs = [
        resident((F * E, h0)),     # w0 (BN-folded, bf16)
        resident((1, h0)),         # b0
        resident((h0, h1)),        # w1 (BN-folded, bf16)
        resident((1, h1)),         # b1
        resident((1, h1)),         # w2 as a row (final N=1 dot stays on the VPU)
        pl.BlockSpec(memory_space=pltpu.MemorySpace.SMEM),   # lin_b + b2 scalar
    ]
    weight_args = [w0, b0, w1, b1, w2_row, bias]

    if use_onehot:
        # Fold the linear weight as an extra table column; pad vocab to 128
        # lanes for the one-hot contraction. Table kept f32 (FM is
        # cancellation-sensitive; vocab is small here so VMEM is not an issue).
        vpad = _round_up(vocab, 128)
        emb_lin = jnp.zeros((vpad, E + 1), jnp.float32)
        emb_lin = emb_lin.at[:vocab, :E].set(params["emb"].astype(jnp.float32))
        emb_lin = emb_lin.at[:vocab, E:].set(params["lin_w"].astype(jnp.float32))

        kernel = functools.partial(_deepfm_onehot_kernel,
                                   num_fields=F, embed_dim=E)
        data_specs = [pl.BlockSpec((tb, F), lambda i: (i, 0)),
                      resident((vpad, E + 1))]
        data_args = [x_pad, emb_lin]
        gather_flops = 2 * b_pad * F * vpad * (E + 1)
        gather_bytes = x_pad.size * 4 + emb_lin.size * 4
        data_bytes = _pad_bytes((tb, F), 4) + _pad_bytes((vpad, E + 1), 4)
    else:
        # Table stays in HBM; one XLA gather feeds a pipelined activation slab
        # [tb, F*E + F] per grid step (emb fields first, then linear columns).
        emb_part = params["emb"].astype(jnp.float32)[x_pad].reshape(b_pad, F * E)
        lin_part = params["lin_w"].astype(jnp.float32)[x_pad][..., 0]   # [b_pad, F]
        slab = jnp.concatenate([emb_part, lin_part], axis=1)            # [b_pad, F*E+F]

        kernel = functools.partial(_deepfm_pregathered_kernel,
                                   num_fields=F, embed_dim=E)
        data_specs = [pl.BlockSpec((tb, F * E + F), lambda i: (i, 0))]
        data_args = [slab]
        gather_flops = 0
        gather_bytes = slab.size * 4
        data_bytes = _pad_bytes((tb, F * E + F), 4)

    # Explicit VMEM budget (lane-padded, x2 for double buffering, + headroom).
    weight_bytes = (_pad_bytes((F * E, h0), 2) + _pad_bytes((1, h0), 4)
                    + _pad_bytes((h0, h1), 2) + _pad_bytes((1, h1), 4)
                    + _pad_bytes((1, h1), 4))
    out_bytes = _pad_bytes((1, 1, tb), 4)
    vmem_limit = int(min(max(2 * (weight_bytes + data_bytes + out_bytes) + (8 << 20),
                             32 << 20), 64 << 20))

    mlp_flops = 2 * b_pad * (F * E * h0 + h0 * h1) + b_pad * (2 * h1 + 6 * F * E)
    flops = gather_flops + mlp_flops
    bytes_accessed = (gather_bytes + w0.size * 2 + w1.size * 2
                      + (h0 + 2 * h1 + 1) * 4 + b_pad * 4)

    out = pl.pallas_call(
        kernel,
        out_shape=jax.ShapeDtypeStruct((nb, 1, tb), jnp.float32),
        grid_spec=pltpu.PrefetchScalarGridSpec(
            num_scalar_prefetch=0,
            grid=(nb,),
            in_specs=data_specs + weight_specs,
            out_specs=pl.BlockSpec((1, 1, tb), lambda i: (i, 0, 0)),
        ),
        compiler_params=pltpu.CompilerParams(
            dimension_semantics=("parallel",),
            vmem_limit_bytes=vmem_limit),
        cost_estimate=pl.CostEstimate(
            flops=int(flops), transcendentals=int(b_pad),
            bytes_accessed=int(bytes_accessed)),
    )(*data_args, *weight_args)

    return out.reshape(-1)[:batch].reshape(batch, 1)


def deepfm_reference(x, params, *, num_fields, embed_dim):
    """Pure-JAX reference (mirrors the PyTorch forward in eval mode)."""
    batch = x.shape[0]
    emb = params["emb"][x]                                    # [B, F, E]
    lin = jnp.sum(params["lin_w"][x][..., 0], axis=1, keepdims=True) + params["lin_b"]
    sum_f = jnp.sum(emb, axis=1)
    sum_sq = jnp.sum(emb * emb, axis=1)
    fm = 0.5 * jnp.sum(sum_f**2 - sum_sq, axis=1, keepdims=True)
    h = emb.reshape(batch, num_fields * embed_dim)
    h = h @ params["w0"] + params["b0"]
    h = jnp.maximum(h * params["s0"] + params["sh0"], 0.0)
    h = h @ params["w1"] + params["b1"]
    h = jnp.maximum(h * params["s1"] + params["sh1"], 0.0)
    mlp = h @ params["w2"] + params["b2"]
    return jax.nn.sigmoid(lin + fm + mlp)


def init_params(key, field_dims, embed_dim, mlp_dims):
    total = int(sum(field_dims))
    embed_out = len(field_dims) * embed_dim
    ks = jax.random.split(key, 8)
    eps = 1e-5

    def bn_fold(dim):
        gamma = jnp.ones((1, dim), jnp.float32)
        beta = jnp.zeros((1, dim), jnp.float32)
        mean = jnp.zeros((1, dim), jnp.float32)
        var = jnp.ones((1, dim), jnp.float32)
        scale = gamma / jnp.sqrt(var + eps)
        shift = beta - mean * scale
        return scale, shift

    s0, sh0 = bn_fold(mlp_dims[0])
    s1, sh1 = bn_fold(mlp_dims[1])
    return {
        "emb": jax.random.normal(ks[0], (total, embed_dim), jnp.float32) * 0.1,
        "lin_w": jax.random.normal(ks[1], (total, 1), jnp.float32) * 0.1,
        "lin_b": jnp.zeros((1, 1), jnp.float32),
        "w0": jax.random.normal(ks[2], (embed_out, mlp_dims[0]), jnp.float32) * 0.1,
        "b0": jax.random.normal(ks[3], (1, mlp_dims[0]), jnp.float32) * 0.01,
        "s0": s0, "sh0": sh0,
        "w1": jax.random.normal(ks[4], (mlp_dims[0], mlp_dims[1]), jnp.float32) * 0.1,
        "b1": jax.random.normal(ks[5], (1, mlp_dims[1]), jnp.float32) * 0.01,
        "s1": s1, "sh1": sh1,
        "w2": jax.random.normal(ks[6], (mlp_dims[1], 1), jnp.float32) * 0.1,
        "b2": jnp.zeros((1, 1), jnp.float32),
    }


if __name__ == "__main__":
    field_dims = (12, 8, 6, 6)            # sum = 32 vocab rows
    embed_dim = 8
    mlp_dims = (32, 16)
    dropout = 0.2                         # identity at eval time
    batch = 2
    num_fields = len(field_dims)

    key = jax.random.PRNGKey(0)
    kp, kx = jax.random.split(key)
    params = init_params(kp, field_dims, embed_dim, mlp_dims)

    # Raw per-field indices, then add per-field offsets (as FeaturesEmbedding does).
    maxvals = jnp.array(field_dims, jnp.int32)
    x_raw = (jax.random.randint(kx, (batch, num_fields), 0, 1 << 30) % maxvals).astype(jnp.int32)
    offsets = jnp.concatenate(
        [jnp.zeros((1,), jnp.int32), jnp.cumsum(maxvals)[:-1]]).astype(jnp.int32)
    x = x_raw + offsets[None, :]

    ref = deepfm_reference(x, params, num_fields=num_fields, embed_dim=embed_dim)

    # Small-vocab path: one-hot MXU gather, VMEM-resident table.
    out = deepfm_forward(x, params, num_fields=num_fields, embed_dim=embed_dim)
    out = jax.block_until_ready(out)
    assert out.shape == (batch, 1)
    assert jnp.allclose(out, ref, rtol=1e-2, atol=2e-3), (out, ref)

    # Large-vocab path (forced): HBM table + XLA pre-gathered pipelined slab.
    out2 = deepfm_forward(x, params, num_fields=num_fields, embed_dim=embed_dim,
                          use_onehot=False)
    out2 = jax.block_until_ready(out2)
    assert out2.shape == (batch, 1)
    assert jnp.allclose(out2, ref, rtol=1e-2, atol=2e-3), (out2, ref)

    print("KERNEL_OK")
</pallas_src>

<mosaic_0001>
module attributes {stable_mosaic.version = 11 : i64} {
  func.func @_deepfm_onehot_kernel(%arg0: i32, %arg1: memref<128x4xi32, #tpu.memory_space<vmem>>, %arg2: memref<128x9xf32, #tpu.memory_space<vmem>>, %arg3: memref<32x32xbf16, #tpu.memory_space<vmem>>, %arg4: memref<1x32xf32, #tpu.memory_space<vmem>>, %arg5: memref<32x16xbf16, #tpu.memory_space<vmem>>, %arg6: memref<1x16xf32, #tpu.memory_space<vmem>>, %arg7: memref<1x16xf32, #tpu.memory_space<vmem>>, %arg8: memref<1xf32, #tpu.memory_space<smem>>, %arg9: memref<1x1x128xf32, #tpu.memory_space<vmem>>) attributes {dimension_semantics = [#tpu.dimension_semantics<parallel>], iteration_bounds = array<i64: 1>, scalar_prefetch = 0 : i64, scratch_operands = 0 : i64, tpu.core_type = #tpu.core_type<tc>, window_params = [{transform_indices = @transform_0, window_bounds = array<i64: 128, 4>}, {pipeline_mode = #tpu.pipeline_mode<synchronous>, transform_indices = @transform_1, window_bounds = array<i64: 128, 9>}, {pipeline_mode = #tpu.pipeline_mode<synchronous>, transform_indices = @transform_2, window_bounds = array<i64: 32, 32>}, {pipeline_mode = #tpu.pipeline_mode<synchronous>, transform_indices = @transform_3, window_bounds = array<i64: 1, 32>}, {pipeline_mode = #tpu.pipeline_mode<synchronous>, transform_indices = @transform_4, window_bounds = array<i64: 32, 16>}, {pipeline_mode = #tpu.pipeline_mode<synchronous>, transform_indices = @transform_5, window_bounds = array<i64: 1, 16>}, {pipeline_mode = #tpu.pipeline_mode<synchronous>, transform_indices = @transform_6, window_bounds = array<i64: 1, 16>}, {transform_indices = @transform_7, window_bounds = array<i64: 1>}, {transform_indices = @transform_8, window_bounds = array<i64: 1, 1, 128>}]} {
    %c0 = arith.constant 0 : index
    %c0_0 = arith.constant 0 : index
    %0 = vector.load %arg1[%c0, %c0_0] : memref<128x4xi32, #tpu.memory_space<vmem>>, vector<128x4xi32>
    %1 = tpu.iota {dimensions = array<i32: 1>} : vector<128x128xi32>
    %c0_1 = arith.constant 0 : index
    %c0_2 = arith.constant 0 : index
    %2 = vector.load %arg2[%c0_1, %c0_2] : memref<128x9xf32, #tpu.memory_space<vmem>>, vector<128x9xf32>
    %3 = vector.extract_strided_slice %0 {offsets = [0, 0], sizes = [128, 1], strides = [1, 1]} : vector<128x4xi32> to vector<128x1xi32>
    %4 = vector.broadcast %3 : vector<128x1xi32> to vector<128x128xi32>
    %5 = arith.cmpi eq, %4, %1 : vector<128x128xi32>
    %6 = arith.extui %5 : vector<128x128xi1> to vector<128x128xi32>
    %7 = arith.sitofp %6 : vector<128x128xi32> to vector<128x128xf32>
    %cst = arith.constant dense<0.000000e+00> : vector<128x9xf32>
    %8 = tpu.matmul %7, %2, %cst {dimension_numbers = #tpu.dot_dimension_numbers<[1], [0], [0], [1], [0, 0, 1, 1], [], []>} : vector<128x128xf32>, vector<128x9xf32>, vector<128x9xf32> -> vector<128x9xf32>
    %9 = vector.extract_strided_slice %0 {offsets = [0, 1], sizes = [128, 1], strides = [1, 1]} : vector<128x4xi32> to vector<128x1xi32>
    %10 = vector.broadcast %9 : vector<128x1xi32> to vector<128x128xi32>
    %11 = arith.cmpi eq, %10, %1 : vector<128x128xi32>
    %12 = arith.extui %11 : vector<128x128xi1> to vector<128x128xi32>
    %13 = arith.sitofp %12 : vector<128x128xi32> to vector<128x128xf32>
    %cst_3 = arith.constant dense<0.000000e+00> : vector<128x9xf32>
    %14 = tpu.matmul %13, %2, %cst_3 {dimension_numbers = #tpu.dot_dimension_numbers<[1], [0], [0], [1], [0, 0, 1, 1], [], []>} : vector<128x128xf32>, vector<128x9xf32>, vector<128x9xf32> -> vector<128x9xf32>
    %15 = vector.extract_strided_slice %0 {offsets = [0, 2], sizes = [128, 1], strides = [1, 1]} : vector<128x4xi32> to vector<128x1xi32>
    %16 = vector.broadcast %15 : vector<128x1xi32> to vector<128x128xi32>
    %17 = arith.cmpi eq, %16, %1 : vector<128x128xi32>
    %18 = arith.extui %17 : vector<128x128xi1> to vector<128x128xi32>
    %19 = arith.sitofp %18 : vector<128x128xi32> to vector<128x128xf32>
    %cst_4 = arith.constant dense<0.000000e+00> : vector<128x9xf32>
    %20 = tpu.matmul %19, %2, %cst_4 {dimension_numbers = #tpu.dot_dimension_numbers<[1], [0], [0], [1], [0, 0, 1, 1], [], []>} : vector<128x128xf32>, vector<128x9xf32>, vector<128x9xf32> -> vector<128x9xf32>
    %21 = vector.extract_strided_slice %0 {offsets = [0, 3], sizes = [128, 1], strides = [1, 1]} : vector<128x4xi32> to vector<128x1xi32>
    %22 = vector.broadcast %21 : vector<128x1xi32> to vector<128x128xi32>
    %23 = arith.cmpi eq, %22, %1 : vector<128x128xi32>
    %24 = arith.extui %23 : vector<128x128xi1> to vector<128x128xi32>
    %25 = arith.sitofp %24 : vector<128x128xi32> to vector<128x128xf32>
    %cst_5 = arith.constant dense<0.000000e+00> : vector<128x9xf32>
    %26 = tpu.matmul %25, %2, %cst_5 {dimension_numbers = #tpu.dot_dimension_numbers<[1], [0], [0], [1], [0, 0, 1, 1], [], []>} : vector<128x128xf32>, vector<128x9xf32>, vector<128x9xf32> -> vector<128x9xf32>
    %27 = vector.extract_strided_slice %8 {offsets = [0, 0], sizes = [128, 8], strides = [1, 1]} : vector<128x9xf32> to vector<128x8xf32>
    %28 = vector.extract_strided_slice %14 {offsets = [0, 0], sizes = [128, 8], strides = [1, 1]} : vector<128x9xf32> to vector<128x8xf32>
    %29 = vector.extract_strided_slice %20 {offsets = [0, 0], sizes = [128, 8], strides = [1, 1]} : vector<128x9xf32> to vector<128x8xf32>
    %30 = vector.extract_strided_slice %26 {offsets = [0, 0], sizes = [128, 8], strides = [1, 1]} : vector<128x9xf32> to vector<128x8xf32>
    %31 = vector.extract_strided_slice %8 {offsets = [0, 8], sizes = [128, 1], strides = [1, 1]} : vector<128x9xf32> to vector<128x1xf32>
    %cst_6 = arith.constant 0.000000e+00 : f32
    %32 = vector.broadcast %cst_6 : f32 to vector<128x1xf32>
    %33 = arith.addf %32, %31 : vector<128x1xf32>
    %34 = vector.extract_strided_slice %14 {offsets = [0, 8], sizes = [128, 1], strides = [1, 1]} : vector<128x9xf32> to vector<128x1xf32>
    %35 = arith.addf %33, %34 : vector<128x1xf32>
    %36 = vector.extract_strided_slice %20 {offsets = [0, 8], sizes = [128, 1], strides = [1, 1]} : vector<128x9xf32> to vector<128x1xf32>
    %37 = arith.addf %35, %36 : vector<128x1xf32>
    %38 = vector.extract_strided_slice %26 {offsets = [0, 8], sizes = [128, 1], strides = [1, 1]} : vector<128x9xf32> to vector<128x1xf32>
    %39 = arith.addf %37, %38 : vector<128x1xf32>
    %40 = tpu.concatenate %27, %28, %29, %30 in 1 : vector<128x8xf32>, vector<128x8xf32>, vector<128x8xf32>, vector<128x8xf32> -> vector<128x32xf32>
    %c0_7 = arith.constant 0 : index
    %41 = memref.load %arg8[%c0_7] : memref<1xf32, #tpu.memory_space<smem>>
    %cst_8 = arith.constant 0.000000e+00 : f32
    %42 = vector.broadcast %cst_8 : f32 to vector<128x8xf32>
    %43 = arith.addf %42, %27 : vector<128x8xf32>
    %44 = arith.addf %43, %28 : vector<128x8xf32>
    %45 = arith.addf %44, %29 : vector<128x8xf32>
    %46 = arith.addf %45, %30 : vector<128x8xf32>
    %47 = arith.mulf %27, %27 : vector<128x8xf32>
    %cst_9 = arith.constant 0.000000e+00 : f32
    %48 = vector.broadcast %cst_9 : f32 to vector<128x8xf32>
    %49 = arith.addf %48, %47 : vector<128x8xf32>
    %50 = arith.mulf %28, %28 : vector<128x8xf32>
    %51 = arith.addf %49, %50 : vector<128x8xf32>
    %52 = arith.mulf %29, %29 : vector<128x8xf32>
    %53 = arith.addf %51, %52 : vector<128x8xf32>
    %54 = arith.mulf %30, %30 : vector<128x8xf32>
    %55 = arith.addf %53, %54 : vector<128x8xf32>
    %56 = arith.mulf %46, %46 : vector<128x8xf32>
    %57 = arith.subf %56, %55 : vector<128x8xf32>
    %cst_10 = arith.constant dense<0.000000e+00> : vector<128xf32>
    %58 = vector.multi_reduction <add>, %57, %cst_10 [1] : vector<128x8xf32> to vector<128xf32>
    %59 = vector.shape_cast %58 : vector<128xf32> to vector<128x1xf32>
    %cst_11 = arith.constant 5.000000e-01 : f32
    %60 = vector.broadcast %cst_11 : f32 to vector<128x1xf32>
    %61 = arith.mulf %60, %59 : vector<128x1xf32>
    %62 = arith.truncf %40 : vector<128x32xf32> to vector<128x32xbf16>
    %c0_12 = arith.constant 0 : index
    %c0_13 = arith.constant 0 : index
    %63 = vector.load %arg3[%c0_12, %c0_13] : memref<32x32xbf16, #tpu.memory_space<vmem>>, vector<32x32xbf16>
    %cst_14 = arith.constant dense<0.000000e+00> : vector<128x32xf32>
    %64 = tpu.matmul %62, %63, %cst_14 {dimension_numbers = #tpu.dot_dimension_numbers<[1], [0], [0], [1], [0, 0, 1, 1], [], []>} : vector<128x32xbf16>, vector<32x32xbf16>, vector<128x32xf32> -> vector<128x32xf32>
    %c0_15 = arith.constant 0 : index
    %c0_16 = arith.constant 0 : index
    %65 = vector.load %arg4[%c0_15, %c0_16] : memref<1x32xf32, #tpu.memory_space<vmem>>, vector<1x32xf32>
    %66 = vector.broadcast %65 : vector<1x32xf32> to vector<128x32xf32>
    %67 = arith.addf %64, %66 : vector<128x32xf32>
    %cst_17 = arith.constant 0.000000e+00 : f32
    %68 = vector.broadcast %cst_17 : f32 to vector<128x32xf32>
    %69 = arith.maximumf %67, %68 : vector<128x32xf32>
    %70 = arith.truncf %69 : vector<128x32xf32> to vector<128x32xbf16>
    %c0_18 = arith.constant 0 : index
    %c0_19 = arith.constant 0 : index
    %71 = vector.load %arg5[%c0_18, %c0_19] : memref<32x16xbf16, #tpu.memory_space<vmem>>, vector<32x16xbf16>
    %cst_20 = arith.constant dense<0.000000e+00> : vector<128x16xf32>
    %72 = tpu.matmul %70, %71, %cst_20 {dimension_numbers = #tpu.dot_dimension_numbers<[1], [0], [0], [1], [0, 0, 1, 1], [], []>} : vector<128x32xbf16>, vector<32x16xbf16>, vector<128x16xf32> -> vector<128x16xf32>
    %c0_21 = arith.constant 0 : index
    %c0_22 = arith.constant 0 : index
    %73 = vector.load %arg6[%c0_21, %c0_22] : memref<1x16xf32, #tpu.memory_space<vmem>>, vector<1x16xf32>
    %74 = vector.broadcast %73 : vector<1x16xf32> to vector<128x16xf32>
    %75 = arith.addf %72, %74 : vector<128x16xf32>
    %cst_23 = arith.constant 0.000000e+00 : f32
    %76 = vector.broadcast %cst_23 : f32 to vector<128x16xf32>
    %77 = arith.maximumf %75, %76 : vector<128x16xf32>
    %c0_24 = arith.constant 0 : index
    %c0_25 = arith.constant 0 : index
    %78 = vector.load %arg7[%c0_24, %c0_25] : memref<1x16xf32, #tpu.memory_space<vmem>>, vector<1x16xf32>
    %79 = vector.broadcast %78 : vector<1x16xf32> to vector<128x16xf32>
    %80 = arith.mulf %77, %79 : vector<128x16xf32>
    %cst_26 = arith.constant dense<0.000000e+00> : vector<128xf32>
    %81 = vector.multi_reduction <add>, %80, %cst_26 [1] : vector<128x16xf32> to vector<128xf32>
    %82 = vector.shape_cast %81 : vector<128xf32> to vector<128x1xf32>
    %83 = arith.addf %39, %61 : vector<128x1xf32>
    %84 = arith.addf %83, %82 : vector<128x1xf32>
    %85 = vector.broadcast %41 : f32 to vector<128x1xf32>
    %86 = arith.addf %84, %85 : vector<128x1xf32>
    %87 = arith.negf %86 : vector<128x1xf32>
    %88 = math.exp %87 : vector<128x1xf32>
    %cst_27 = arith.constant 1.000000e+00 : f32
    %89 = vector.broadcast %cst_27 : f32 to vector<128x1xf32>
    %90 = arith.addf %89, %88 : vector<128x1xf32>
    %91 = arith.divf %89, %90 : vector<128x1xf32>
    %92 = tpu.transpose %91, [1, 0] : vector<128x1xf32> -> vector<1x128xf32>
    %93 = vector.shape_cast %92 : vector<1x128xf32> to vector<1x1x128xf32>
    %c0_28 = arith.constant 0 : index
    %c0_29 = arith.constant 0 : index
    %c0_30 = arith.constant 0 : index
    %94 = vector.load %arg9[%c0_28, %c0_29, %c0_30] : memref<1x1x128xf32, #tpu.memory_space<vmem>>, vector<1x1x128xf32>
    tpu.vector_store %arg9[%c0_28, %c0_29, %c0_30], %93 {strides = array<i32>} : memref<1x1x128xf32, #tpu.memory_space<vmem>>, vector<1x1x128xf32>,
    return
  }
  func.func @transform_0(%arg0: i32) -> (i32, i32) {
    %c0_i32 = arith.constant 0 : i32
    %c0_i32_0 = arith.constant 0 : i32
    return %arg0, %c0_i32 : i32, i32
  }
  func.func @transform_1(%arg0: i32) -> (i32, i32) {
    %c0_i32 = arith.constant 0 : i32
    %c0_i32_0 = arith.constant 0 : i32
    %c0_i32_1 = arith.constant 0 : i32
    return %c0_i32, %c0_i32_0 : i32, i32
  }
  func.func @transform_2(%arg0: i32) -> (i32, i32) {
    %c0_i32 = arith.constant 0 : i32
    %c0_i32_0 = arith.constant 0 : i32
    %c0_i32_1 = arith.constant 0 : i32
    return %c0_i32, %c0_i32_0 : i32, i32
  }
  func.func @transform_3(%arg0: i32) -> (i32, i32) {
    %c0_i32 = arith.constant 0 : i32
    %c0_i32_0 = arith.constant 0 : i32
    %c0_i32_1 = arith.constant 0 : i32
    return %c0_i32, %c0_i32_0 : i32, i32
  }
  func.func @transform_4(%arg0: i32) -> (i32, i32) {
    %c0_i32 = arith.constant 0 : i32
    %c0_i32_0 = arith.constant 0 : i32
    %c0_i32_1 = arith.constant 0 : i32
    return %c0_i32, %c0_i32_0 : i32, i32
  }
  func.func @transform_5(%arg0: i32) -> (i32, i32) {
    %c0_i32 = arith.constant 0 : i32
    %c0_i32_0 = arith.constant 0 : i32
    %c0_i32_1 = arith.constant 0 : i32
    return %c0_i32, %c0_i32_0 : i32, i32
  }
  func.func @transform_6(%arg0: i32) -> (i32, i32) {
    %c0_i32 = arith.constant 0 : i32
    %c0_i32_0 = arith.constant 0 : i32
    %c0_i32_1 = arith.constant 0 : i32
    return %c0_i32, %c0_i32_0 : i32, i32
  }
  func.func @transform_7(%arg0: i32) -> i32 {
    %c0_i32 = arith.constant 0 : i32
    %c0_i32_0 = arith.constant 0 : i32
    return %c0_i32 : i32
  }
  func.func @transform_8(%arg0: i32) -> (i32, i32, i32) {
    %c0_i32 = arith.constant 0 : i32
    %c0_i32_0 = arith.constant 0 : i32
    %c0_i32_1 = arith.constant 0 : i32
    return %arg0, %c0_i32, %c0_i32_0 : i32, i32, i32
  }
}

</mosaic_0001>

<llo_original>
// kernel: tpu_custom_call.1
$region0: #{tpu_custom_call.1}
  #allocation0 [shape = 'u32[]', space=smem, size = 0x4, offset = 0x4, fixed_abs, tag = 'smem constant byte address 0x4 - core index']
  #allocation1 [shape = 'u32[72,128]{1,0:T(1,128)}', space=vmem, size = 0x9000, scoped, tag = 'internal scratch']
  #allocation2 [shape = 'f32[1]{0:T(128)S(6)}', space=smem, size = 0x200, scoped, tag = 'scoped memory for tpu_custom_call.1']
  %s0 = inlined_call_operand.vmem [shape: s32[128,4], index: 0, kind: input, shape index: {}]
  %s1 = inlined_call_operand.vmem [shape: f32[128,9], index: 1, kind: input, shape index: {}]
  %s2 = inlined_call_operand.vmem [shape: bf16[32,32], index: 2, kind: input, shape index: {}]
  %s3 = inlined_call_operand.vmem [shape: f32[1,32], index: 3, kind: input, shape index: {}]
  %s4 = inlined_call_operand.vmem [shape: bf16[32,16], index: 4, kind: input, shape index: {}]
  %s5 = inlined_call_operand.vmem [shape: f32[1,16], index: 5, kind: input, shape index: {}]
  %s6 = inlined_call_operand.vmem [shape: f32[1,16], index: 6, kind: input, shape index: {}]
  %s7 = inlined_call_operand.<no memory space> [shape: f32[1], index: 7, kind: input, shape index: {}]
  %s8 = inlined_call_operand.hbm [shape: f32[1,1,128], index: 8, kind: output, shape index: {}]
  %s9 = sld [smem:[#allocation0]]
  $region42: #{tpu_custom_call.1} parent=0
    _
  %s11 = ssub.s32 1, %s9
  %s12 = scalar_select 0, %s11, %s9
  %13 = sst [smem:[#allocation2]] %s7
  $region1: #{tpu_custom_call.1} parent=0
    #allocation3 [shape = 'u8[512]{0}', space=vmem, size = 0x400, scoped, tag = 'output window, operand 0, single buffered']
    #allocation4 [shape = 's32[1]{0}', space=sflag, size = 0x4, scoped, tag = 'scoped memory for tpu_custom_call.1']
    %14 = vsyncpa [#allocation4], 0
    // Predicated region
    $region2: #{tpu_custom_call.1} parent=1 // pred_check
      _
    $region3: #{tpu_custom_call.1} parent=1 // pred_check_branch
      %16 = sbr.rel (0) target = $region5
    $region4: #{tpu_custom_call.1} parent=1 // pred_region
      _
    $region5: #{tpu_custom_call.1} parent=1 // pred_fallthru
      _
    // Predicated region
    $region6: #{tpu_custom_call.1} parent=1 // pred_check
      _
    $region7: #{tpu_custom_call.1} parent=1 // pred_check_branch
      %18 = sbr.rel (0) target = $region9
    $region8: #{tpu_custom_call.1} parent=1 // pred_region
      _
    $region9: #{tpu_custom_call.1} parent=1 // pred_fallthru
      _
    // Predicated region
    $region10: #{tpu_custom_call.1} parent=1 // pred_check
      _
    $region11: #{tpu_custom_call.1} parent=1 // pred_check_branch
      %20 = sbr.rel (0) target = $region13
    $region12: #{tpu_custom_call.1} parent=1 // pred_region
      _
    $region13: #{tpu_custom_call.1} parent=1 // pred_fallthru
      _
    // Predicated region
    $region14: #{tpu_custom_call.1} parent=1 // pred_check
      _
    $region15: #{tpu_custom_call.1} parent=1 // pred_check_branch
      %22 = sbr.rel (0) target = $region17
    $region16: #{tpu_custom_call.1} parent=1 // pred_region
      _
    $region17: #{tpu_custom_call.1} parent=1 // pred_fallthru
      _
    // Predicated region
    $region18: #{tpu_custom_call.1} parent=1 // pred_check
      _
    $region19: #{tpu_custom_call.1} parent=1 // pred_check_branch
      %24 = sbr.rel (0) target = $region21
    $region20: #{tpu_custom_call.1} parent=1 // pred_region
      _
    $region21: #{tpu_custom_call.1} parent=1 // pred_fallthru
      _
    // Predicated region
    $region22: #{tpu_custom_call.1} parent=1 // pred_check
      _
    $region23: #{tpu_custom_call.1} parent=1 // pred_check_branch
      %26 = sbr.rel (0) target = $region25
    $region24: #{tpu_custom_call.1} parent=1 // pred_region
      _
    $region25: #{tpu_custom_call.1} parent=1 // pred_fallthru
      _
    // Predicated region
    $region26: #{tpu_custom_call.1} parent=1 // pred_check
      _
    $region27: #{tpu_custom_call.1} parent=1 // pred_check_branch
      %28 = sbr.rel (0) target = $region29
    $region28: #{tpu_custom_call.1} parent=1 // pred_region
      _
    $region29: #{tpu_custom_call.1} parent=1 // pred_fallthru
      _
    // Predicated region
    $region30: #{tpu_custom_call.1} parent=1 // pred_check
      _
    $region31: #{tpu_custom_call.1} parent=1 // pred_check_branch
      %30 = sbr.rel (0) target = $region33
    $region32: #{tpu_custom_call.1} parent=1 // pred_region
      _
    $region33: #{tpu_custom_call.1} parent=1 // pred_fallthru
      _
    %v32 = vld [vmem:[%s0] sm:$0xff]
    %v33 = vld [vmem:[%s0 + $0x8] sm:$0xff]
    %v34 = vld [vmem:[%s0 + $0x10] sm:$0xff]
    %v35 = vld [vmem:[%s0 + $0x18] sm:$0xff]
    %v36 = vld [vmem:[%s0 + $0x20] sm:$0xff]
    %v37 = vld [vmem:[%s0 + $0x28] sm:$0xff]
    %v38 = vld [vmem:[%s0 + $0x30] sm:$0xff]
    %v39 = vld [vmem:[%s0 + $0x38] sm:$0xff]
    %v40 = vld [vmem:[%s0 + $0x40] sm:$0xff]
    %v41 = vld [vmem:[%s0 + $0x48] sm:$0xff]
    %v42 = vld [vmem:[%s0 + $0x50] sm:$0xff]
    %v43 = vld [vmem:[%s0 + $0x58] sm:$0xff]
    %v44 = vld [vmem:[%s0 + $0x60] sm:$0xff]
    %v45 = vld [vmem:[%s0 + $0x68] sm:$0xff]
    %v46 = vld [vmem:[%s0 + $0x70] sm:$0xff]
    %v47 = vld [vmem:[%s0 + $0x78] sm:$0xff]
    %v48 = vlaneseq
    %v49 = vand.u32 %v48, 127
    %v50 = vld [vmem:[%s1] sm:$0xff]
    %v51 = vld [vmem:[%s1 + $0x8] sm:$0xff]
    %v52 = vld [vmem:[%s1 + $0x10] sm:$0xff]
    %v53 = vld [vmem:[%s1 + $0x18] sm:$0xff]
    %v54 = vld [vmem:[%s1 + $0x20] sm:$0xff]
    %v55 = vld [vmem:[%s1 + $0x28] sm:$0xff]
    %v56 = vld [vmem:[%s1 + $0x30] sm:$0xff]
    %v57 = vld [vmem:[%s1 + $0x38] sm:$0xff]
    %v58 = vld [vmem:[%s1 + $0x40] sm:$0xff]
    %v59 = vld [vmem:[%s1 + $0x48] sm:$0xff]
    %v60 = vld [vmem:[%s1 + $0x50] sm:$0xff]
    %v61 = vld [vmem:[%s1 + $0x58] sm:$0xff]
    %v62 = vld [vmem:[%s1 + $0x60] sm:$0xff]
    %v63 = vld [vmem:[%s1 + $0x68] sm:$0xff]
    %v64 = vld [vmem:[%s1 + $0x70] sm:$0xff]
    %v65 = vld [vmem:[%s1 + $0x78] sm:$0xff]
    %66 = vset.pattern.permute.xlu0 0
    %67 = vperm.xlu0 %66, %v32
    %v68 = vpop.permute.xlu0 %67
    %69 = vset.pattern.permute.xlu0 0
    %70 = vperm.xlu0 %69, %v33
    %v71 = vpop.permute.xlu0 %70
    %72 = vset.pattern.permute.xlu0 0
    %73 = vperm.xlu0 %72, %v34
    %v74 = vpop.permute.xlu0 %73
    %75 = vset.pattern.permute.xlu0 0
    %76 = vperm.xlu0 %75, %v35
    %v77 = vpop.permute.xlu0 %76
    %78 = vset.pattern.permute.xlu0 0
    %79 = vperm.xlu0 %78, %v36
    %v80 = vpop.permute.xlu0 %79
    %81 = vset.pattern.permute.xlu0 0
    %82 = vperm.xlu0 %81, %v37
    %v83 = vpop.permute.xlu0 %82
    %84 = vset.pattern.permute.xlu0 0
    %85 = vperm.xlu0 %84, %v38
    %v86 = vpop.permute.xlu0 %85
    %87 = vset.pattern.permute.xlu0 0
    %88 = vperm.xlu0 %87, %v39
    %v89 = vpop.permute.xlu0 %88
    %90 = vset.pattern.permute.xlu0 0
    %91 = vperm.xlu0 %90, %v40
    %v92 = vpop.permute.xlu0 %91
    %93 = vset.pattern.permute.xlu0 0
    %94 = vperm.xlu0 %93, %v41
    %v95 = vpop.permute.xlu0 %94
    %96 = vset.pattern.permute.xlu0 0
    %97 = vperm.xlu0 %96, %v42
    %v98 = vpop.permute.xlu0 %97
    %99 = vset.pattern.permute.xlu0 0
    %100 = vperm.xlu0 %99, %v43
    %v101 = vpop.permute.xlu0 %100
    %102 = vset.pattern.permute.xlu0 0
    %103 = vperm.xlu0 %102, %v44
    %v104 = vpop.permute.xlu0 %103
    %105 = vset.pattern.permute.xlu0 0
    %106 = vperm.xlu0 %105, %v45
    %v107 = vpop.permute.xlu0 %106
    %108 = vset.pattern.permute.xlu0 0
    %109 = vperm.xlu0 %108, %v46
    %v110 = vpop.permute.xlu0 %109
    %111 = vset.pattern.permute.xlu0 0
    %112 = vperm.xlu0 %111, %v47
    %v113 = vpop.permute.xlu0 %112
    %vm114 = vcmp.eq.s32.totalorder %v68, %v49
    %vm115 = vcmp.eq.s32.totalorder %v71, %v49
    %vm116 = vcmp.eq.s32.totalorder %v74, %v49
    %vm117 = vcmp.eq.s32.totalorder %v77, %v49
    %vm118 = vcmp.eq.s32.totalorder %v80, %v49
    %vm119 = vcmp.eq.s32.totalorder %v83, %v49
    %vm120 = vcmp.eq.s32.totalorder %v86, %v49
    %vm121 = vcmp.eq.s32.totalorder %v89, %v49
    %vm122 = vcmp.eq.s32.totalorder %v92, %v49
    %vm123 = vcmp.eq.s32.totalorder %v95, %v49
    %vm124 = vcmp.eq.s32.totalorder %v98, %v49
    %vm125 = vcmp.eq.s32.totalorder %v101, %v49
    %vm126 = vcmp.eq.s32.totalorder %v104, %v49
    %vm127 = vcmp.eq.s32.totalorder %v107, %v49
    %vm128 = vcmp.eq.s32.totalorder %v110, %v49
    %vm129 = vcmp.eq.s32.totalorder %v113, %v49
    %v130 = vsel %vm114, 1, 0
    %v131 = vsel %vm115, 1, 0
    %v132 = vsel %vm116, 1, 0
    %v133 = vsel %vm117, 1, 0
    %v134 = vsel %vm118, 1, 0
    %v135 = vsel %vm119, 1, 0
    %v136 = vsel %vm120, 1, 0
    %v137 = vsel %vm121, 1, 0
    %v138 = vsel %vm122, 1, 0
    %v139 = vsel %vm123, 1, 0
    %v140 = vsel %vm124, 1, 0
    %v141 = vsel %vm125, 1, 0
    %v142 = vsel %vm126, 1, 0
    %v143 = vsel %vm127, 1, 0
    %v144 = vsel %vm128, 1, 0
    %v145 = vsel %vm129, 1, 0
    %v146 = vcvt.s32.f32 %v130
    %v147 = vcvt.s32.f32 %v131
    %v148 = vcvt.s32.f32 %v132
    %v149 = vcvt.s32.f32 %v133
    %v150 = vcvt.s32.f32 %v134
    %v151 = vcvt.s32.f32 %v135
    %v152 = vcvt.s32.f32 %v136
    %v153 = vcvt.s32.f32 %v137
    %v154 = vcvt.s32.f32 %v138
    %v155 = vcvt.s32.f32 %v139
    %v156 = vcvt.s32.f32 %v140
    %v157 = vcvt.s32.f32 %v141
    %v158 = vcvt.s32.f32 %v142
    %v159 = vcvt.s32.f32 %v143
    %v160 = vcvt.s32.f32 %v144
    %v161 = vcvt.s32.f32 %v145
    %162 = vmatpush.msra.mxu0 %v65
    %163 = vmatpush.msra.mxu0 %v64
    %164 = vmatpush.msra.mxu0 %v63
    %165 = vmatpush.msra.mxu0 %v62
    %166 = vmatpush.msra.mxu0 %v61
    %167 = vmatpush.msra.mxu0 %v60
    %168 = vmatpush.msra.mxu0 %v59
    %169 = vmatpush.msra.mxu0 %v58
    %170 = vmatpush.msra.mxu0 %v57
    %171 = vmatpush.msra.mxu0 %v56
    %172 = vmatpush.msra.mxu0 %v55
    %173 = vmatpush.msra.mxu0 %v54
    %174 = vmatpush.msra.mxu0 %v53
    %175 = vmatpush.msra.mxu0 %v52
    %176 = vmatpush.msra.mxu0 %v51
    %177 = vmatpush.msra.mxu0 %v50
    %178 = vmatmul.f32.gmra.mxu0 %v146
    %v179 = vpop.f32.mrf.mxu0
    %v180 = vadd.f32 0.0, %v179
    %181 = vmatmul.f32.gmra.mxu0 %v147
    %v182 = vpop.f32.mrf.mxu0
    %v183 = vadd.f32 0.0, %v182
    %184 = vmatmul.f32.gmra.mxu0 %v148
    %v185 = vpop.f32.mrf.mxu0
    %v186 = vadd.f32 0.0, %v185
    %187 = vmatmul.f32.gmra.mxu0 %v149
    %v188 = vpop.f32.mrf.mxu0
    %v189 = vadd.f32 0.0, %v188
    %190 = vmatmul.f32.gmra.mxu0 %v150
    %v191 = vpop.f32.mrf.mxu0
    %v192 = vadd.f32 0.0, %v191
    %193 = vmatmul.f32.gmra.mxu0 %v151
    %v194 = vpop.f32.mrf.mxu0
    %v195 = vadd.f32 0.0, %v194
    %196 = vmatmul.f32.gmra.mxu0 %v152
    %v197 = vpop.f32.mrf.mxu0
    %v198 = vadd.f32 0.0, %v197
    %199 = vmatmul.f32.gmra.mxu0 %v153
    %v200 = vpop.f32.mrf.mxu0
    %v201 = vadd.f32 0.0, %v200
    %202 = vmatmul.f32.gmra.mxu0 %v154
    %v203 = vpop.f32.mrf.mxu0
    %v204 = vadd.f32 0.0, %v203
    %205 = vmatmul.f32.gmra.mxu0 %v155
    %v206 = vpop.f32.mrf.mxu0
    %v207 = vadd.f32 0.0, %v206
    %208 = vmatmul.f32.gmra.mxu0 %v156
    %v209 = vpop.f32.mrf.mxu0
    %v210 = vadd.f32 0.0, %v209
    %211 = vmatmul.f32.gmra.mxu0 %v157
    %v212 = vpop.f32.mrf.mxu0
    %v213 = vadd.f32 0.0, %v212
    %214 = vmatmul.f32.gmra.mxu0 %v158
    %v215 = vpop.f32.mrf.mxu0
    %v216 = vadd.f32 0.0, %v215
    %217 = vmatmul.f32.gmra.mxu0 %v159
    %v218 = vpop.f32.mrf.mxu0
    %v219 = vadd.f32 0.0, %v218
    %220 = vmatmul.f32.gmra.mxu0 %v160
    %v221 = vpop.f32.mrf.mxu0
    %v222 = vadd.f32 0.0, %v221
    %223 = vmatmul.f32.gmra.mxu0 %v161
    %v224 = vpop.f32.mrf.mxu0
    %v225 = vadd.f32 0.0, %v224
    %226 = vdwg.mxu0
    %227 = vset.pattern.permute.xlu0 1
    %228 = vperm.xlu0 %227, %v32
    %v229 = vpop.permute.xlu0 %228
    %230 = vset.pattern.permute.xlu0 1
    %231 = vperm.xlu0 %230, %v33
    %v232 = vpop.permute.xlu0 %231
    %233 = vset.pattern.permute.xlu0 1
    %234 = vperm.xlu0 %233, %v34
    %v235 = vpop.permute.xlu0 %234
    %236 = vset.pattern.permute.xlu0 1
    %237 = vperm.xlu0 %236, %v35
    %v238 = vpop.permute.xlu0 %237
    %239 = vset.pattern.permute.xlu0 1
    %240 = vperm.xlu0 %239, %v36
    %v241 = vpop.permute.xlu0 %240
    %242 = vset.pattern.permute.xlu0 1
    %243 = vperm.xlu0 %242, %v37
    %v244 = vpop.permute.xlu0 %243
    %245 = vset.pattern.permute.xlu0 1
    %246 = vperm.xlu0 %245, %v38
    %v247 = vpop.permute.xlu0 %246
    %248 = vset.pattern.permute.xlu0 1
    %249 = vperm.xlu0 %248, %v39
    %v250 = vpop.permute.xlu0 %249
    %251 = vset.pattern.permute.xlu0 1
    %252 = vperm.xlu0 %251, %v40
    %v253 = vpop.permute.xlu0 %252
    %254 = vset.pattern.permute.xlu0 1
    %255 = vperm.xlu0 %254, %v41
    %v256 = vpop.permute.xlu0 %255
    %257 = vset.pattern.permute.xlu0 1
    %258 = vperm.xlu0 %257, %v42
    %v259 = vpop.permute.xlu0 %258
    %260 = vset.pattern.permute.xlu0 1
    %261 = vperm.xlu0 %260, %v43
    %v262 = vpop.permute.xlu0 %261
    %263 = vset.pattern.permute.xlu0 1
    %264 = vperm.xlu0 %263, %v44
    %v265 = vpop.permute.xlu0 %264
    %266 = vset.pattern.permute.xlu0 1
    %267 = vperm.xlu0 %266, %v45
    %v268 = vpop.permute.xlu0 %267
    %269 = vset.pattern.permute.xlu0 1
    %270 = vperm.xlu0 %269, %v46
    %v271 = vpop.permute.xlu0 %270
    %272 = vset.pattern.permute.xlu0 1
    %273 = vperm.xlu0 %272, %v47
    %v274 = vpop.permute.xlu0 %273
    %vm275 = vcmp.eq.s32.totalorder %v229, %v49
    %vm276 = vcmp.eq.s32.totalorder %v232, %v49
    %vm277 = vcmp.eq.s32.totalorder %v235, %v49
    %vm278 = vcmp.eq.s32.totalorder %v238, %v49
    %vm279 = vcmp.eq.s32.totalorder %v241, %v49
    %vm280 = vcmp.eq.s32.totalorder %v244, %v49
    %vm281 = vcmp.eq.s32.totalorder %v247, %v49
    %vm282 = vcmp.eq.s32.totalorder %v250, %v49
    %vm283 = vcmp.eq.s32.totalorder %v253, %v49
    %vm284 = vcmp.eq.s32.totalorder %v256, %v49
    %vm285 = vcmp.eq.s32.totalorder %v259, %v49
    %vm286 = vcmp.eq.s32.totalorder %v262, %v49
    %vm287 = vcmp.eq.s32.totalorder %v265, %v49
    %vm288 = vcmp.eq.s32.totalorder %v268, %v49
    %vm289 = vcmp.eq.s32.totalorder %v271, %v49
    %vm290 = vcmp.eq.s32.totalorder %v274, %v49
    %v291 = vsel %vm275, 1, 0
    %v292 = vsel %vm276, 1, 0
    %v293 = vsel %vm277, 1, 0
    %v294 = vsel %vm278, 1, 0
    %v295 = vsel %vm279, 1, 0
    %v296 = vsel %vm280, 1, 0
    %v297 = vsel %vm281, 1, 0
    %v298 = vsel %vm282, 1, 0
    %v299 = vsel %vm283, 1, 0
    %v300 = vsel %vm284, 1, 0
    %v301 = vsel %vm285, 1, 0
    %v302 = vsel %vm286, 1, 0
    %v303 = vsel %vm287, 1, 0
    %v304 = vsel %vm288, 1, 0
    %v305 = vsel %vm289, 1, 0
    %v306 = vsel %vm290, 1, 0
    %v307 = vcvt.s32.f32 %v291
    %v308 = vcvt.s32.f32 %v292
    %v309 = vcvt.s32.f32 %v293
    %v310 = vcvt.s32.f32 %v294
    %v311 = vcvt.s32.f32 %v295
    %v312 = vcvt.s32.f32 %v296
    %v313 = vcvt.s32.f32 %v297
    %v314 = vcvt.s32.f32 %v298
    %v315 = vcvt.s32.f32 %v299
    %v316 = vcvt.s32.f32 %v300
    %v317 = vcvt.s32.f32 %v301
    %v318 = vcvt.s32.f32 %v302
    %v319 = vcvt.s32.f32 %v303
    %v320 = vcvt.s32.f32 %v304
    %v321 = vcvt.s32.f32 %v305
    %v322 = vcvt.s32.f32 %v306
    %323 = vmatpush.msra.mxu0 %v65
    %324 = vmatpush.msra.mxu0 %v64
    %325 = vmatpush.msra.mxu0 %v63
    %326 = vmatpush.msra.mxu0 %v62
    %327 = vmatpush.msra.mxu0 %v61
    %328 = vmatpush.msra.mxu0 %v60
    %329 = vmatpush.msra.mxu0 %v59
    %330 = vmatpush.msra.mxu0 %v58
    %331 = vmatpush.msra.mxu0 %v57
    %332 = vmatpush.msra.mxu0 %v56
    %333 = vmatpush.msra.mxu0 %v55
    %334 = vmatpush.msra.mxu0 %v54
    %335 = vmatpush.msra.mxu0 %v53
    %336 = vmatpush.msra.mxu0 %v52
    %337 = vmatpush.msra.mxu0 %v51
    %338 = vmatpush.msra.mxu0 %v50
    %339 = vmatmul.f32.gmra.mxu0 %v307
    %v340 = vpop.f32.mrf.mxu0
    %v341 = vadd.f32 0.0, %v340
    %342 = vmatmul.f32.gmra.mxu0 %v308
    %v343 = vpop.f32.mrf.mxu0
    %v344 = vadd.f32 0.0, %v343
    %345 = vmatmul.f32.gmra.mxu0 %v309
    %v346 = vpop.f32.mrf.mxu0
    %v347 = vadd.f32 0.0, %v346
    %348 = vmatmul.f32.gmra.mxu0 %v310
    %v349 = vpop.f32.mrf.mxu0
    %v350 = vadd.f32 0.0, %v349
    %351 = vmatmul.f32.gmra.mxu0 %v311
    %v352 = vpop.f32.mrf.mxu0
    %v353 = vadd.f32 0.0, %v352
    %354 = vmatmul.f32.gmra.mxu0 %v312
    %v355 = vpop.f32.mrf.mxu0
    %v356 = vadd.f32 0.0, %v355
    %357 = vmatmul.f32.gmra.mxu0 %v313
    %v358 = vpop.f32.mrf.mxu0
    %v359 = vadd.f32 0.0, %v358
    %360 = vmatmul.f32.gmra.mxu0 %v314
    %v361 = vpop.f32.mrf.mxu0
    %v362 = vadd.f32 0.0, %v361
    %363 = vmatmul.f32.gmra.mxu0 %v315
    %v364 = vpop.f32.mrf.mxu0
    %v365 = vadd.f32 0.0, %v364
    %366 = vmatmul.f32.gmra.mxu0 %v316
    %v367 = vpop.f32.mrf.mxu0
    %v368 = vadd.f32 0.0, %v367
    %369 = vmatmul.f32.gmra.mxu0 %v317
    %v370 = vpop.f32.mrf.mxu0
    %v371 = vadd.f32 0.0, %v370
    %372 = vmatmul.f32.gmra.mxu0 %v318
    %v373 = vpop.f32.mrf.mxu0
    %v374 = vadd.f32 0.0, %v373
    %375 = vmatmul.f32.gmra.mxu0 %v319
    %v376 = vpop.f32.mrf.mxu0
    %v377 = vadd.f32 0.0, %v376
    %378 = vmatmul.f32.gmra.mxu0 %v320
    %v379 = vpop.f32.mrf.mxu0
    %v380 = vadd.f32 0.0, %v379
    %381 = vmatmul.f32.gmra.mxu0 %v321
    %v382 = vpop.f32.mrf.mxu0
    %v383 = vadd.f32 0.0, %v382
    %384 = vmatmul.f32.gmra.mxu0 %v322
    %v385 = vpop.f32.mrf.mxu0
    %v386 = vadd.f32 0.0, %v385
    %387 = vdwg.mxu0
    %388 = vset.pattern.permute.xlu0 2
    %389 = vperm.xlu0 %388, %v32
    %v390 = vpop.permute.xlu0 %389
    %391 = vset.pattern.permute.xlu0 2
    %392 = vperm.xlu0 %391, %v33
    %v393 = vpop.permute.xlu0 %392
    %394 = vset.pattern.permute.xlu0 2
    %395 = vperm.xlu0 %394, %v34
    %v396 = vpop.permute.xlu0 %395
    %397 = vset.pattern.permute.xlu0 2
    %398 = vperm.xlu0 %397, %v35
    %v399 = vpop.permute.xlu0 %398
    %400 = vset.pattern.permute.xlu0 2
    %401 = vperm.xlu0 %400, %v36
    %v402 = vpop.permute.xlu0 %401
    %403 = vset.pattern.permute.xlu0 2
    %404 = vperm.xlu0 %403, %v37
    %v405 = vpop.permute.xlu0 %404
    %406 = vset.pattern.permute.xlu0 2
    %407 = vperm.xlu0 %406, %v38
    %v408 = vpop.permute.xlu0 %407
    %409 = vset.pattern.permute.xlu0 2
    %410 = vperm.xlu0 %409, %v39
    %v411 = vpop.permute.xlu0 %410
    %412 = vset.pattern.permute.xlu0 2
    %413 = vperm.xlu0 %412, %v40
    %v414 = vpop.permute.xlu0 %413
    %415 = vset.pattern.permute.xlu0 2
    %416 = vperm.xlu0 %415, %v41
    %v417 = vpop.permute.xlu0 %416
    %418 = vset.pattern.permute.xlu0 2
    %419 = vperm.xlu0 %418, %v42
    %v420 = vpop.permute.xlu0 %419
    %421 = vset.pattern.permute.xlu0 2
    %422 = vperm.xlu0 %421, %v43
    %v423 = vpop.permute.xlu0 %422
    %424 = vset.pattern.permute.xlu0 2
    %425 = vperm.xlu0 %424, %v44
    %v426 = vpop.permute.xlu0 %425
    %427 = vset.pattern.permute.xlu0 2
    %428 = vperm.xlu0 %427, %v45
    %v429 = vpop.permute.xlu0 %428
    %430 = vset.pattern.permute.xlu0 2
    %431 = vperm.xlu0 %430, %v46
    %v432 = vpop.permute.xlu0 %431
    %433 = vset.pattern.permute.xlu0 2
    %434 = vperm.xlu0 %433, %v47
    %v435 = vpop.permute.xlu0 %434
    %vm436 = vcmp.eq.s32.totalorder %v390, %v49
    %vm437 = vcmp.eq.s32.totalorder %v393, %v49
    %vm438 = vcmp.eq.s32.totalorder %v396, %v49
    %vm439 = vcmp.eq.s32.totalorder %v399, %v49
    %vm440 = vcmp.eq.s32.totalorder %v402, %v49
    %vm441 = vcmp.eq.s32.totalorder %v405, %v49
    %vm442 = vcmp.eq.s32.totalorder %v408, %v49
    %vm443 = vcmp.eq.s32.totalorder %v411, %v49
    %vm444 = vcmp.eq.s32.totalorder %v414, %v49
    %vm445 = vcmp.eq.s32.totalorder %v417, %v49
    %vm446 = vcmp.eq.s32.totalorder %v420, %v49
    %vm447 = vcmp.eq.s32.totalorder %v423, %v49
    %vm448 = vcmp.eq.s32.totalorder %v426, %v49
    %vm449 = vcmp.eq.s32.totalorder %v429, %v49
    %vm450 = vcmp.eq.s32.totalorder %v432, %v49
    %vm451 = vcmp.eq.s32.totalorder %v435, %v49
    %v452 = vsel %vm436, 1, 0
    %v453 = vsel %vm437, 1, 0
    %v454 = vsel %vm438, 1, 0
    %v455 = vsel %vm439, 1, 0
    %v456 = vsel %vm440, 1, 0
    %v457 = vsel %vm441, 1, 0
    %v458 = vsel %vm442, 1, 0
    %v459 = vsel %vm443, 1, 0
    %v460 = vsel %vm444, 1, 0
    %v461 = vsel %vm445, 1, 0
    %v462 = vsel %vm446, 1, 0
    %v463 = vsel %vm447, 1, 0
    %v464 = vsel %vm448, 1, 0
    %v465 = vsel %vm449, 1, 0
    %v466 = vsel %vm450, 1, 0
    %v467 = vsel %vm451, 1, 0
    %v468 = vcvt.s32.f32 %v452
    %v469 = vcvt.s32.f32 %v453
    %v470 = vcvt.s32.f32 %v454
    %v471 = vcvt.s32.f32 %v455
    %v472 = vcvt.s32.f32 %v456
    %v473 = vcvt.s32.f32 %v457
    %v474 = vcvt.s32.f32 %v458
    %v475 = vcvt.s32.f32 %v459
    %v476 = vcvt.s32.f32 %v460
    %v477 = vcvt.s32.f32 %v461
    %v478 = vcvt.s32.f32 %v462
    %v479 = vcvt.s32.f32 %v463
    %v480 = vcvt.s32.f32 %v464
    %v481 = vcvt.s32.f32 %v465
    %v482 = vcvt.s32.f32 %v466
    %v483 = vcvt.s32.f32 %v467
    %484 = vmatpush.msra.mxu0 %v65
    %485 = vmatpush.msra.mxu0 %v64
    %486 = vmatpush.msra.mxu0 %v63
    %487 = vmatpush.msra.mxu0 %v62
    %488 = vmatpush.msra.mxu0 %v61
    %489 = vmatpush.msra.mxu0 %v60
    %490 = vmatpush.msra.mxu0 %v59
    %491 = vmatpush.msra.mxu0 %v58
    %492 = vmatpush.msra.mxu0 %v57
    %493 = vmatpush.msra.mxu0 %v56
    %494 = vmatpush.msra.mxu0 %v55
    %495 = vmatpush.msra.mxu0 %v54
    %496 = vmatpush.msra.mxu0 %v53
    %497 = vmatpush.msra.mxu0 %v52
    %498 = vmatpush.msra.mxu0 %v51
    %499 = vmatpush.msra.mxu0 %v50
    %500 = vmatmul.f32.gmra.mxu0 %v468
    %v501 = vpop.f32.mrf.mxu0
    %v502 = vadd.f32 0.0, %v501
    %503 = vmatmul.f32.gmra.mxu0 %v469
    %v504 = vpop.f32.mrf.mxu0
    %v505 = vadd.f32 0.0, %v504
    %506 = vmatmul.f32.gmra.mxu0 %v470
    %v507 = vpop.f32.mrf.mxu0
    %v508 = vadd.f32 0.0, %v507
    %509 = vmatmul.f32.gmra.mxu0 %v471
    %v510 = vpop.f32.mrf.mxu0
    %v511 = vadd.f32 0.0, %v510
    %512 = vmatmul.f32.gmra.mxu0 %v472
    %v513 = vpop.f32.mrf.mxu0
    %v514 = vadd.f32 0.0, %v513
    %515 = vmatmul.f32.gmra.mxu0 %v473
    %v516 = vpop.f32.mrf.mxu0
    %v517 = vadd.f32 0.0, %v516
    %518 = vmatmul.f32.gmra.mxu0 %v474
    %v519 = vpop.f32.mrf.mxu0
    %v520 = vadd.f32 0.0, %v519
    %521 = vmatmul.f32.gmra.mxu0 %v475
    %v522 = vpop.f32.mrf.mxu0
    %v523 = vadd.f32 0.0, %v522
    %524 = vmatmul.f32.gmra.mxu0 %v476
    %v525 = vpop.f32.mrf.mxu0
    %v526 = vadd.f32 0.0, %v525
    %527 = vmatmul.f32.gmra.mxu0 %v477
    %v528 = vpop.f32.mrf.mxu0
    %v529 = vadd.f32 0.0, %v528
    %530 = vmatmul.f32.gmra.mxu0 %v478
    %v531 = vpop.f32.mrf.mxu0
    %v532 = vadd.f32 0.0, %v531
    %533 = vmatmul.f32.gmra.mxu0 %v479
    %v534 = vpop.f32.mrf.mxu0
    %v535 = vadd.f32 0.0, %v534
    %536 = vmatmul.f32.gmra.mxu0 %v480
    %v537 = vpop.f32.mrf.mxu0
    %v538 = vadd.f32 0.0, %v537
    %539 = vmatmul.f32.gmra.mxu0 %v481
    %v540 = vpop.f32.mrf.mxu0
    %v541 = vadd.f32 0.0, %v540
    %542 = vmatmul.f32.gmra.mxu0 %v482
    %v543 = vpop.f32.mrf.mxu0
    %v544 = vadd.f32 0.0, %v543
    %545 = vmatmul.f32.gmra.mxu0 %v483
    %v546 = vpop.f32.mrf.mxu0
    %v547 = vadd.f32 0.0, %v546
    %548 = vdwg.mxu0
    %549 = vset.pattern.permute.xlu0 3
    %550 = vperm.xlu0 %549, %v32
    %v551 = vpop.permute.xlu0 %550
    %552 = vset.pattern.permute.xlu0 3
    %553 = vperm.xlu0 %552, %v33
    %v554 = vpop.permute.xlu0 %553
    %555 = vset.pattern.permute.xlu0 3
    %556 = vperm.xlu0 %555, %v34
    %v557 = vpop.permute.xlu0 %556
    %558 = vset.pattern.permute.xlu0 3
    %559 = vperm.xlu0 %558, %v35
    %v560 = vpop.permute.xlu0 %559
    %561 = vset.pattern.permute.xlu0 3
    %562 = vperm.xlu0 %561, %v36
    %v563 = vpop.permute.xlu0 %562
    %564 = vset.pattern.permute.xlu0 3
    %565 = vperm.xlu0 %564, %v37
    %v566 = vpop.permute.xlu0 %565
    %567 = vset.pattern.permute.xlu0 3
    %568 = vperm.xlu0 %567, %v38
    %v569 = vpop.permute.xlu0 %568
    %570 = vset.pattern.permute.xlu0 3
    %571 = vperm.xlu0 %570, %v39
    %v572 = vpop.permute.xlu0 %571
    %573 = vset.pattern.permute.xlu0 3
    %574 = vperm.xlu0 %573, %v40
    %v575 = vpop.permute.xlu0 %574
    %576 = vset.pattern.permute.xlu0 3
    %577 = vperm.xlu0 %576, %v41
    %v578 = vpop.permute.xlu0 %577
    %579 = vset.pattern.permute.xlu0 3
    %580 = vperm.xlu0 %579, %v42
    %v581 = vpop.permute.xlu0 %580
    %582 = vset.pattern.permute.xlu0 3
    %583 = vperm.xlu0 %582, %v43
    %v584 = vpop.permute.xlu0 %583
    %585 = vset.pattern.permute.xlu0 3
    %586 = vperm.xlu0 %585, %v44
    %v587 = vpop.permute.xlu0 %586
    %588 = vset.pattern.permute.xlu0 3
    %589 = vperm.xlu0 %588, %v45
    %v590 = vpop.permute.xlu0 %589
    %591 = vset.pattern.permute.xlu0 3
    %592 = vperm.xlu0 %591, %v46
    %v593 = vpop.permute.xlu0 %592
    %594 = vset.pattern.permute.xlu0 3
    %595 = vperm.xlu0 %594, %v47
    %v596 = vpop.permute.xlu0 %595
    %vm597 = vcmp.eq.s32.totalorder %v551, %v49
    %vm598 = vcmp.eq.s32.totalorder %v554, %v49
    %vm599 = vcmp.eq.s32.totalorder %v557, %v49
    %vm600 = vcmp.eq.s32.totalorder %v560, %v49
    %vm601 = vcmp.eq.s32.totalorder %v563, %v49
    %vm602 = vcmp.eq.s32.totalorder %v566, %v49
    %vm603 = vcmp.eq.s32.totalorder %v569, %v49
    %vm604 = vcmp.eq.s32.totalorder %v572, %v49
    %vm605 = vcmp.eq.s32.totalorder %v575, %v49
    %vm606 = vcmp.eq.s32.totalorder %v578, %v49
    %vm607 = vcmp.eq.s32.totalorder %v581, %v49
    %vm608 = vcmp.eq.s32.totalorder %v584, %v49
    %vm609 = vcmp.eq.s32.totalorder %v587, %v49
    %vm610 = vcmp.eq.s32.totalorder %v590, %v49
    %vm611 = vcmp.eq.s32.totalorder %v593, %v49
    %vm612 = vcmp.eq.s32.totalorder %v596, %v49
    %v613 = vsel %vm597, 1, 0
    %v614 = vsel %vm598, 1, 0
    %v615 = vsel %vm599, 1, 0
    %v616 = vsel %vm600, 1, 0
    %v617 = vsel %vm601, 1, 0
    %v618 = vsel %vm602, 1, 0
    %v619 = vsel %vm603, 1, 0
    %v620 = vsel %vm604, 1, 0
    %v621 = vsel %vm605, 1, 0
    %v622 = vsel %vm606, 1, 0
    %v623 = vsel %vm607, 1, 0
    %v624 = vsel %vm608, 1, 0
    %v625 = vsel %vm609, 1, 0
    %v626 = vsel %vm610, 1, 0
    %v627 = vsel %vm611, 1, 0
    %v628 = vsel %vm612, 1, 0
    %v629 = vcvt.s32.f32 %v613
    %v630 = vcvt.s32.f32 %v614
    %v631 = vcvt.s32.f32 %v615
    %v632 = vcvt.s32.f32 %v616
    %v633 = vcvt.s32.f32 %v617
    %v634 = vcvt.s32.f32 %v618
    %v635 = vcvt.s32.f32 %v619
    %v636 = vcvt.s32.f32 %v620
    %v637 = vcvt.s32.f32 %v621
    %v638 = vcvt.s32.f32 %v622
    %v639 = vcvt.s32.f32 %v623
    %v640 = vcvt.s32.f32 %v624
    %v641 = vcvt.s32.f32 %v625
    %v642 = vcvt.s32.f32 %v626
    %v643 = vcvt.s32.f32 %v627
    %v644 = vcvt.s32.f32 %v628
    %645 = vmatpush.msra.mxu0 %v65
    %646 = vmatpush.msra.mxu0 %v64
    %647 = vmatpush.msra.mxu0 %v63
    %648 = vmatpush.msra.mxu0 %v62
    %649 = vmatpush.msra.mxu0 %v61
    %650 = vmatpush.msra.mxu0 %v60
    %651 = vmatpush.msra.mxu0 %v59
    %652 = vmatpush.msra.mxu0 %v58
    %653 = vmatpush.msra.mxu0 %v57
    %654 = vmatpush.msra.mxu0 %v56
    %655 = vmatpush.msra.mxu0 %v55
    %656 = vmatpush.msra.mxu0 %v54
    %657 = vmatpush.msra.mxu0 %v53
    %658 = vmatpush.msra.mxu0 %v52
    %659 = vmatpush.msra.mxu0 %v51
    %660 = vmatpush.msra.mxu0 %v50
    %661 = vmatmul.f32.gmra.mxu0 %v629
    %v662 = vpop.f32.mrf.mxu0
    %v663 = vadd.f32 0.0, %v662
    %664 = vmatmul.f32.gmra.mxu0 %v630
    %v665 = vpop.f32.mrf.mxu0
    %v666 = vadd.f32 0.0, %v665
    %667 = vmatmul.f32.gmra.mxu0 %v631
    %v668 = vpop.f32.mrf.mxu0
    %v669 = vadd.f32 0.0, %v668
    %670 = vmatmul.f32.gmra.mxu0 %v632
    %v671 = vpop.f32.mrf.mxu0
    %v672 = vadd.f32 0.0, %v671
    %673 = vmatmul.f32.gmra.mxu0 %v633
    %v674 = vpop.f32.mrf.mxu0
    %v675 = vadd.f32 0.0, %v674
    %676 = vmatmul.f32.gmra.mxu0 %v634
    %v677 = vpop.f32.mrf.mxu0
    %v678 = vadd.f32 0.0, %v677
    %679 = vmatmul.f32.gmra.mxu0 %v635
    %v680 = vpop.f32.mrf.mxu0
    %v681 = vadd.f32 0.0, %v680
    %682 = vmatmul.f32.gmra.mxu0 %v636
    %v683 = vpop.f32.mrf.mxu0
    %v684 = vadd.f32 0.0, %v683
    %685 = vmatmul.f32.gmra.mxu0 %v637
    %v686 = vpop.f32.mrf.mxu0
    %v687 = vadd.f32 0.0, %v686
    %688 = vmatmul.f32.gmra.mxu0 %v638
    %v689 = vpop.f32.mrf.mxu0
    %v690 = vadd.f32 0.0, %v689
    %691 = vmatmul.f32.gmra.mxu0 %v639
    %v692 = vpop.f32.mrf.mxu0
    %v693 = vadd.f32 0.0, %v692
    %694 = vmatmul.f32.gmra.mxu0 %v640
    %v695 = vpop.f32.mrf.mxu0
    %v696 = vadd.f32 0.0, %v695
    %697 = vmatmul.f32.gmra.mxu0 %v641
    %v698 = vpop.f32.mrf.mxu0
    %v699 = vadd.f32 0.0, %v698
    %700 = vmatmul.f32.gmra.mxu0 %v642
    %v701 = vpop.f32.mrf.mxu0
    %v702 = vadd.f32 0.0, %v701
    %703 = vmatmul.f32.gmra.mxu0 %v643
    %v704 = vpop.f32.mrf.mxu0
    %v705 = vadd.f32 0.0, %v704
    %706 = vmatmul.f32.gmra.mxu0 %v644
    %v707 = vpop.f32.mrf.mxu0
    %v708 = vadd.f32 0.0, %v707
    %709 = vdwg.mxu0
    %v710 = vadd.f32 %v180, 0.0
    %v711 = vadd.f32 %v183, 0.0
    %v712 = vadd.f32 %v186, 0.0
    %v713 = vadd.f32 %v189, 0.0
    %v714 = vadd.f32 %v192, 0.0
    %v715 = vadd.f32 %v195, 0.0
    %v716 = vadd.f32 %v198, 0.0
    %v717 = vadd.f32 %v201, 0.0
    %v718 = vadd.f32 %v204, 0.0
    %v719 = vadd.f32 %v207, 0.0
    %v720 = vadd.f32 %v210, 0.0
    %v721 = vadd.f32 %v213, 0.0
    %v722 = vadd.f32 %v216, 0.0
    %v723 = vadd.f32 %v219, 0.0
    %v724 = vadd.f32 %v222, 0.0
    %v725 = vadd.f32 %v225, 0.0
    %v726 = vadd.f32 %v710, %v341
    %v727 = vadd.f32 %v711, %v344
    %v728 = vadd.f32 %v712, %v347
    %v729 = vadd.f32 %v713, %v350
    %v730 = vadd.f32 %v714, %v353
    %v731 = vadd.f32 %v715, %v356
    %v732 = vadd.f32 %v716, %v359
    %v733 = vadd.f32 %v717, %v362
    %v734 = vadd.f32 %v718, %v365
    %v735 = vadd.f32 %v719, %v368
    %v736 = vadd.f32 %v720, %v371
    %v737 = vadd.f32 %v721, %v374
    %v738 = vadd.f32 %v722, %v377
    %v739 = vadd.f32 %v723, %v380
    %v740 = vadd.f32 %v724, %v383
    %v741 = vadd.f32 %v725, %v386
    %v742 = vadd.f32 %v726, %v502
    %v743 = vadd.f32 %v727, %v505
    %v744 = vadd.f32 %v728, %v508
    %v745 = vadd.f32 %v729, %v511
    %v746 = vadd.f32 %v730, %v514
    %v747 = vadd.f32 %v731, %v517
    %v748 = vadd.f32 %v732, %v520
    %v749 = vadd.f32 %v733, %v523
    %v750 = vadd.f32 %v734, %v526
    %v751 = vadd.f32 %v735, %v529
    %v752 = vadd.f32 %v736, %v532
    %v753 = vadd.f32 %v737, %v535
    %v754 = vadd.f32 %v738, %v538
    %v755 = vadd.f32 %v739, %v541
    %v756 = vadd.f32 %v740, %v544
    %v757 = vadd.f32 %v741, %v547
    %v758 = vadd.f32 %v742, %v663
    %v759 = vadd.f32 %v743, %v666
    %v760 = vadd.f32 %v744, %v669
    %v761 = vadd.f32 %v745, %v672
    %v762 = vadd.f32 %v746, %v675
    %v763 = vadd.f32 %v747, %v678
    %v764 = vadd.f32 %v748, %v681
    %v765 = vadd.f32 %v749, %v684
    %v766 = vadd.f32 %v750, %v687
    %v767 = vadd.f32 %v751, %v690
    %v768 = vadd.f32 %v752, %v693
    %v769 = vadd.f32 %v753, %v696
    %v770 = vadd.f32 %v754, %v699
    %v771 = vadd.f32 %v755, %v702
    %v772 = vadd.f32 %v756, %v705
    %v773 = vadd.f32 %v757, %v708
    %790 = vrot.lane.b32.xlu0 %v341, 8
    %v791 = vpop.permute.xlu0 %790
    %792 = vrot.lane.b32.xlu0 %v344, 8
    %v793 = vpop.permute.xlu0 %792
    %794 = vrot.lane.b32.xlu0 %v347, 8
    %v795 = vpop.permute.xlu0 %794
    %796 = vrot.lane.b32.xlu0 %v350, 8
    %v797 = vpop.permute.xlu0 %796
    %798 = vrot.lane.b32.xlu0 %v353, 8
    %v799 = vpop.permute.xlu0 %798
    %800 = vrot.lane.b32.xlu0 %v356, 8
    %v801 = vpop.permute.xlu0 %800
    %802 = vrot.lane.b32.xlu0 %v359, 8
    %v803 = vpop.permute.xlu0 %802
    %804 = vrot.lane.b32.xlu0 %v362, 8
    %v805 = vpop.permute.xlu0 %804
    %806 = vrot.lane.b32.xlu0 %v365, 8
    %v807 = vpop.permute.xlu0 %806
    %808 = vrot.lane.b32.xlu0 %v368, 8
    %v809 = vpop.permute.xlu0 %808
    %810 = vrot.lane.b32.xlu0 %v371, 8
    %v811 = vpop.permute.xlu0 %810
    %812 = vrot.lane.b32.xlu0 %v374, 8
    %v813 = vpop.permute.xlu0 %812
    %814 = vrot.lane.b32.xlu0 %v377, 8
    %v815 = vpop.permute.xlu0 %814
    %816 = vrot.lane.b32.xlu0 %v380, 8
    %v817 = vpop.permute.xlu0 %816
    %818 = vrot.lane.b32.xlu0 %v383, 8
    %v819 = vpop.permute.xlu0 %818
    %820 = vrot.lane.b32.xlu0 %v386, 8
    %v821 = vpop.permute.xlu0 %820
    %854 = vrot.lane.b32.xlu0 %v502, 16
    %v855 = vpop.permute.xlu0 %854
    %856 = vrot.lane.b32.xlu0 %v505, 16
    %v857 = vpop.permute.xlu0 %856
    %858 = vrot.lane.b32.xlu0 %v508, 16
    %v859 = vpop.permute.xlu0 %858
    %860 = vrot.lane.b32.xlu0 %v511, 16
    %v861 = vpop.permute.xlu0 %860
    %862 = vrot.lane.b32.xlu0 %v514, 16
    %v863 = vpop.permute.xlu0 %862
    %864 = vrot.lane.b32.xlu0 %v517, 16
    %v865 = vpop.permute.xlu0 %864
    %866 = vrot.lane.b32.xlu0 %v520, 16
    %v867 = vpop.permute.xlu0 %866
    %868 = vrot.lane.b32.xlu0 %v523, 16
    %v869 = vpop.permute.xlu0 %868
    %870 = vrot.lane.b32.xlu0 %v526, 16
    %v871 = vpop.permute.xlu0 %870
    %872 = vrot.lane.b32.xlu0 %v529, 16
    %v873 = vpop.permute.xlu0 %872
    %874 = vrot.lane.b32.xlu0 %v532, 16
    %v875 = vpop.permute.xlu0 %874
    %876 = vrot.lane.b32.xlu0 %v535, 16
    %v877 = vpop.permute.xlu0 %876
    %878 = vrot.lane.b32.xlu0 %v538, 16
    %v879 = vpop.permute.xlu0 %878
    %880 = vrot.lane.b32.xlu0 %v541, 16
    %v881 = vpop.permute.xlu0 %880
    %882 = vrot.lane.b32.xlu0 %v544, 16
    %v883 = vpop.permute.xlu0 %882
    %884 = vrot.lane.b32.xlu0 %v547, 16
    %v885 = vpop.permute.xlu0 %884
    %918 = vrot.lane.b32.xlu0 %v663, 24
    %v919 = vpop.permute.xlu0 %918
    %920 = vrot.lane.b32.xlu0 %v666, 24
    %v921 = vpop.permute.xlu0 %920
    %922 = vrot.lane.b32.xlu0 %v669, 24
    %v923 = vpop.permute.xlu0 %922
    %924 = vrot.lane.b32.xlu0 %v672, 24
    %v925 = vpop.permute.xlu0 %924
    %926 = vrot.lane.b32.xlu0 %v675, 24
    %v927 = vpop.permute.xlu0 %926
    %928 = vrot.lane.b32.xlu0 %v678, 24
    %v929 = vpop.permute.xlu0 %928
    %930 = vrot.lane.b32.xlu0 %v681, 24
    %v931 = vpop.permute.xlu0 %930
    %932 = vrot.lane.b32.xlu0 %v684, 24
    %v933 = vpop.permute.xlu0 %932
    %934 = vrot.lane.b32.xlu0 %v687, 24
    %v935 = vpop.permute.xlu0 %934
    %936 = vrot.lane.b32.xlu0 %v690, 24
    %v937 = vpop.permute.xlu0 %936
    %938 = vrot.lane.b32.xlu0 %v693, 24
    %v939 = vpop.permute.xlu0 %938
    %940 = vrot.lane.b32.xlu0 %v696, 24
    %v941 = vpop.permute.xlu0 %940
    %942 = vrot.lane.b32.xlu0 %v699, 24
    %v943 = vpop.permute.xlu0 %942
    %944 = vrot.lane.b32.xlu0 %v702, 24
    %v945 = vpop.permute.xlu0 %944
    %946 = vrot.lane.b32.xlu0 %v705, 24
    %v947 = vpop.permute.xlu0 %946
    %948 = vrot.lane.b32.xlu0 %v708, 24
    %v949 = vpop.permute.xlu0 %948
    %vm966 = vcmask 64512
    %v967 = vsel %vm966, %v180, %v791
    %v968 = vsel %vm966, %v183, %v793
    %v969 = vsel %vm966, %v186, %v795
    %v970 = vsel %vm966, %v189, %v797
    %v971 = vsel %vm966, %v192, %v799
    %v972 = vsel %vm966, %v195, %v801
    %v973 = vsel %vm966, %v198, %v803
    %v974 = vsel %vm966, %v201, %v805
    %v975 = vsel %vm966, %v204, %v807
    %v976 = vsel %vm966, %v207, %v809
    %v977 = vsel %vm966, %v210, %v811
    %v978 = vsel %vm966, %v213, %v813
    %v979 = vsel %vm966, %v216, %v815
    %v980 = vsel %vm966, %v219, %v817
    %v981 = vsel %vm966, %v222, %v819
    %v982 = vsel %vm966, %v225, %v821
    %vm983 = vcmask 130048
    %v984 = vsel %vm983, %v967, %v855
    %v985 = vsel %vm983, %v968, %v857
    %v986 = vsel %vm983, %v969, %v859
    %v987 = vsel %vm983, %v970, %v861
    %v988 = vsel %vm983, %v971, %v863
    %v989 = vsel %vm983, %v972, %v865
    %v990 = vsel %vm983, %v973, %v867
    %v991 = vsel %vm983, %v974, %v869
    %v992 = vsel %vm983, %v975, %v871
    %v993 = vsel %vm983, %v976, %v873
    %v994 = vsel %vm983, %v977, %v875
    %v995 = vsel %vm983, %v978, %v877
    %v996 = vsel %vm983, %v979, %v879
    %v997 = vsel %vm983, %v980, %v881
    %v998 = vsel %vm983, %v981, %v883
    %v999 = vsel %vm983, %v982, %v885
    %vm1000 = vcmask 195584
    %v1001 = vsel %vm1000, %v984, %v919
    %v1002 = vsel %vm1000, %v985, %v921
    %v1003 = vsel %vm1000, %v986, %v923
    %v1004 = vsel %vm1000, %v987, %v925
    %v1005 = vsel %vm1000, %v988, %v927
    %v1006 = vsel %vm1000, %v989, %v929
    %v1007 = vsel %vm1000, %v990, %v931
    %v1008 = vsel %vm1000, %v991, %v933
    %v1009 = vsel %vm1000, %v992, %v935
    %v1010 = vsel %vm1000, %v993, %v937
    %v1011 = vsel %vm1000, %v994, %v939
    %v1012 = vsel %vm1000, %v995, %v941
    %v1013 = vsel %vm1000, %v996, %v943
    %v1014 = vsel %vm1000, %v997, %v945
    %v1015 = vsel %vm1000, %v998, %v947
    %v1016 = vsel %vm1000, %v999, %v949
    %s1017 = sld [smem:[#allocation2]]
    %v1018 = vmul.f32 %v180, %v180
    %v1019 = vmul.f32 %v183, %v183
    %v1020 = vmul.f32 %v186, %v186
    %v1021 = vmul.f32 %v189, %v189
    %v1022 = vmul.f32 %v192, %v192
    %v1023 = vmul.f32 %v195, %v195
    %v1024 = vmul.f32 %v198, %v198
    %v1025 = vmul.f32 %v201, %v201
    %v1026 = vmul.f32 %v204, %v204
    %v1027 = vmul.f32 %v207, %v207
    %v1028 = vmul.f32 %v210, %v210
    %v1029 = vmul.f32 %v213, %v213
    %v1030 = vmul.f32 %v216, %v216
    %v1031 = vmul.f32 %v219, %v219
    %v1032 = vmul.f32 %v222, %v222
    %v1033 = vmul.f32 %v225, %v225
    %v1034 = vadd.f32 %v1018, 0.0
    %v1035 = vadd.f32 %v1019, 0.0
    %v1036 = vadd.f32 %v1020, 0.0
    %v1037 = vadd.f32 %v1021, 0.0
    %v1038 = vadd.f32 %v1022, 0.0
    %v1039 = vadd.f32 %v1023, 0.0
    %v1040 = vadd.f32 %v1024, 0.0
    %v1041 = vadd.f32 %v1025, 0.0
    %v1042 = vadd.f32 %v1026, 0.0
    %v1043 = vadd.f32 %v1027, 0.0
    %v1044 = vadd.f32 %v1028, 0.0
    %v1045 = vadd.f32 %v1029, 0.0
    %v1046 = vadd.f32 %v1030, 0.0
    %v1047 = vadd.f32 %v1031, 0.0
    %v1048 = vadd.f32 %v1032, 0.0
    %v1049 = vadd.f32 %v1033, 0.0
    %v1050 = vmul.f32 %v341, %v341
    %v1051 = vmul.f32 %v344, %v344
    %v1052 = vmul.f32 %v347, %v347
    %v1053 = vmul.f32 %v350, %v350
    %v1054 = vmul.f32 %v353, %v353
    %v1055 = vmul.f32 %v356, %v356
    %v1056 = vmul.f32 %v359, %v359
    %v1057 = vmul.f32 %v362, %v362
    %v1058 = vmul.f32 %v365, %v365
    %v1059 = vmul.f32 %v368, %v368
    %v1060 = vmul.f32 %v371, %v371
    %v1061 = vmul.f32 %v374, %v374
    %v1062 = vmul.f32 %v377, %v377
    %v1063 = vmul.f32 %v380, %v380
    %v1064 = vmul.f32 %v383, %v383
    %v1065 = vmul.f32 %v386, %v386
    %v1066 = vadd.f32 %v1034, %v1050
    %v1067 = vadd.f32 %v1035, %v1051
    %v1068 = vadd.f32 %v1036, %v1052
    %v1069 = vadd.f32 %v1037, %v1053
    %v1070 = vadd.f32 %v1038, %v1054
    %v1071 = vadd.f32 %v1039, %v1055
    %v1072 = vadd.f32 %v1040, %v1056
    %v1073 = vadd.f32 %v1041, %v1057
    %v1074 = vadd.f32 %v1042, %v1058
    %v1075 = vadd.f32 %v1043, %v1059
    %v1076 = vadd.f32 %v1044, %v1060
    %v1077 = vadd.f32 %v1045, %v1061
    %v1078 = vadd.f32 %v1046, %v1062
    %v1079 = vadd.f32 %v1047, %v1063
    %v1080 = vadd.f32 %v1048, %v1064
    %v1081 = vadd.f32 %v1049, %v1065
    %v1082 = vmul.f32 %v502, %v502
    %v1083 = vmul.f32 %v505, %v505
    %v1084 = vmul.f32 %v508, %v508
    %v1085 = vmul.f32 %v511, %v511
    %v1086 = vmul.f32 %v514, %v514
    %v1087 = vmul.f32 %v517, %v517
    %v1088 = vmul.f32 %v520, %v520
    %v1089 = vmul.f32 %v523, %v523
    %v1090 = vmul.f32 %v526, %v526
    %v1091 = vmul.f32 %v529, %v529
    %v1092 = vmul.f32 %v532, %v532
    %v1093 = vmul.f32 %v535, %v535
    %v1094 = vmul.f32 %v538, %v538
    %v1095 = vmul.f32 %v541, %v541
    %v1096 = vmul.f32 %v544, %v544
    %v1097 = vmul.f32 %v547, %v547
    %v1098 = vadd.f32 %v1066, %v1082
    %v1099 = vadd.f32 %v1067, %v1083
    %v1100 = vadd.f32 %v1068, %v1084
    %v1101 = vadd.f32 %v1069, %v1085
    %v1102 = vadd.f32 %v1070, %v1086
    %v1103 = vadd.f32 %v1071, %v1087
    %v1104 = vadd.f32 %v1072, %v1088
    %v1105 = vadd.f32 %v1073, %v1089
    %v1106 = vadd.f32 %v1074, %v1090
    %v1107 = vadd.f32 %v1075, %v1091
    %v1108 = vadd.f32 %v1076, %v1092
    %v1109 = vadd.f32 %v1077, %v1093
    %v1110 = vadd.f32 %v1078, %v1094
    %v1111 = vadd.f32 %v1079, %v1095
    %v1112 = vadd.f32 %v1080, %v1096
    %v1113 = vadd.f32 %v1081, %v1097
    %v1114 = vmul.f32 %v663, %v663
    %v1115 = vmul.f32 %v666, %v666
    %v1116 = vmul.f32 %v669, %v669
    %v1117 = vmul.f32 %v672, %v672
    %v1118 = vmul.f32 %v675, %v675
    %v1119 = vmul.f32 %v678, %v678
    %v1120 = vmul.f32 %v681, %v681
    %v1121 = vmul.f32 %v684, %v684
    %v1122 = vmul.f32 %v687, %v687
    %v1123 = vmul.f32 %v690, %v690
    %v1124 = vmul.f32 %v693, %v693
    %v1125 = vmul.f32 %v696, %v696
    %v1126 = vmul.f32 %v699, %v699
    %v1127 = vmul.f32 %v702, %v702
    %v1128 = vmul.f32 %v705, %v705
    %v1129 = vmul.f32 %v708, %v708
    %v1130 = vadd.f32 %v1098, %v1114
    %v1131 = vadd.f32 %v1099, %v1115
    %v1132 = vadd.f32 %v1100, %v1116
    %v1133 = vadd.f32 %v1101, %v1117
    %v1134 = vadd.f32 %v1102, %v1118
    %v1135 = vadd.f32 %v1103, %v1119
    %v1136 = vadd.f32 %v1104, %v1120
    %v1137 = vadd.f32 %v1105, %v1121
    %v1138 = vadd.f32 %v1106, %v1122
    %v1139 = vadd.f32 %v1107, %v1123
    %v1140 = vadd.f32 %v1108, %v1124
    %v1141 = vadd.f32 %v1109, %v1125
    %v1142 = vadd.f32 %v1110, %v1126
    %v1143 = vadd.f32 %v1111, %v1127
    %v1144 = vadd.f32 %v1112, %v1128
    %v1145 = vadd.f32 %v1113, %v1129
    %v1146 = vmul.f32 %v758, %v758
    %v1147 = vmul.f32 %v759, %v759
    %v1148 = vmul.f32 %v760, %v760
    %v1149 = vmul.f32 %v761, %v761
    %v1150 = vmul.f32 %v762, %v762
    %v1151 = vmul.f32 %v763, %v763
    %v1152 = vmul.f32 %v764, %v764
    %v1153 = vmul.f32 %v765, %v765
    %v1154 = vmul.f32 %v766, %v766
    %v1155 = vmul.f32 %v767, %v767
    %v1156 = vmul.f32 %v768, %v768
    %v1157 = vmul.f32 %v769, %v769
    %v1158 = vmul.f32 %v770, %v770
    %v1159 = vmul.f32 %v771, %v771
    %v1160 = vmul.f32 %v772, %v772
    %v1161 = vmul.f32 %v773, %v773
    %v1162 = vsub.f32 %v1146, %v1130
    %v1163 = vsub.f32 %v1147, %v1131
    %v1164 = vsub.f32 %v1148, %v1132
    %v1165 = vsub.f32 %v1149, %v1133
    %v1166 = vsub.f32 %v1150, %v1134
    %v1167 = vsub.f32 %v1151, %v1135
    %v1168 = vsub.f32 %v1152, %v1136
    %v1169 = vsub.f32 %v1153, %v1137
    %v1170 = vsub.f32 %v1154, %v1138
    %v1171 = vsub.f32 %v1155, %v1139
    %v1172 = vsub.f32 %v1156, %v1140
    %v1173 = vsub.f32 %v1157, %v1141
    %v1174 = vsub.f32 %v1158, %v1142
    %v1175 = vsub.f32 %v1159, %v1143
    %v1176 = vsub.f32 %v1160, %v1144
    %v1177 = vsub.f32 %v1161, %v1145
    %v1178 = vsel %vm966, %v1162, 0.0
    %1179 = vadd.xlane.f32.xlu0 %v1178
    %v1180 = vpop.xlane.xlu0 %1179
    %v1181 = vsel %vm966, %v1163, 0.0
    %1182 = vadd.xlane.f32.xlu0 %v1181
    %v1183 = vpop.xlane.xlu0 %1182
    %v1184 = vsel %vm966, %v1164, 0.0
    %1185 = vadd.xlane.f32.xlu0 %v1184
    %v1186 = vpop.xlane.xlu0 %1185
    %v1187 = vsel %vm966, %v1165, 0.0
    %1188 = vadd.xlane.f32.xlu0 %v1187
    %v1189 = vpop.xlane.xlu0 %1188
    %v1190 = vsel %vm966, %v1166, 0.0
    %1191 = vadd.xlane.f32.xlu0 %v1190
    %v1192 = vpop.xlane.xlu0 %1191
    %v1193 = vsel %vm966, %v1167, 0.0
    %1194 = vadd.xlane.f32.xlu0 %v1193
    %v1195 = vpop.xlane.xlu0 %1194
    %v1196 = vsel %vm966, %v1168, 0.0
    %1197 = vadd.xlane.f32.xlu0 %v1196
    %v1198 = vpop.xlane.xlu0 %1197
    %v1199 = vsel %vm966, %v1169, 0.0
    %1200 = vadd.xlane.f32.xlu0 %v1199
    %v1201 = vpop.xlane.xlu0 %1200
    %v1202 = vsel %vm966, %v1170, 0.0
    %1203 = vadd.xlane.f32.xlu0 %v1202
    %v1204 = vpop.xlane.xlu0 %1203
    %v1205 = vsel %vm966, %v1171, 0.0
    %1206 = vadd.xlane.f32.xlu0 %v1205
    %v1207 = vpop.xlane.xlu0 %1206
    %v1208 = vsel %vm966, %v1172, 0.0
    %1209 = vadd.xlane.f32.xlu0 %v1208
    %v1210 = vpop.xlane.xlu0 %1209
    %v1211 = vsel %vm966, %v1173, 0.0
    %1212 = vadd.xlane.f32.xlu0 %v1211
    %v1213 = vpop.xlane.xlu0 %1212
    %v1214 = vsel %vm966, %v1174, 0.0
    %1215 = vadd.xlane.f32.xlu0 %v1214
    %v1216 = vpop.xlane.xlu0 %1215
    %v1217 = vsel %vm966, %v1175, 0.0
    %1218 = vadd.xlane.f32.xlu0 %v1217
    %v1219 = vpop.xlane.xlu0 %1218
    %v1220 = vsel %vm966, %v1176, 0.0
    %1221 = vadd.xlane.f32.xlu0 %v1220
    %v1222 = vpop.xlane.xlu0 %1221
    %v1223 = vsel %vm966, %v1177, 0.0
    %1224 = vadd.xlane.f32.xlu0 %v1223
    %v1225 = vpop.xlane.xlu0 %1224
    %v1226 = vmul.f32 %v1180, 0.5
    %v1227 = vmul.f32 %v1183, 0.5
    %v1228 = vmul.f32 %v1186, 0.5
    %v1229 = vmul.f32 %v1189, 0.5
    %v1230 = vmul.f32 %v1192, 0.5
    %v1231 = vmul.f32 %v1195, 0.5
    %v1232 = vmul.f32 %v1198, 0.5
    %v1233 = vmul.f32 %v1201, 0.5
    %v1234 = vmul.f32 %v1204, 0.5
    %v1235 = vmul.f32 %v1207, 0.5
    %v1236 = vmul.f32 %v1210, 0.5
    %v1237 = vmul.f32 %v1213, 0.5
    %v1238 = vmul.f32 %v1216, 0.5
    %v1239 = vmul.f32 %v1219, 0.5
    %v1240 = vmul.f32 %v1222, 0.5
    %v1241 = vmul.f32 %v1225, 0.5
    %v1242 = vpack.c.bf16 %v1002, %v1001
    %v1243 = vpack.c.bf16 %v1004, %v1003
    %v1244 = vpack.c.bf16 %v1006, %v1005
    %v1245 = vpack.c.bf16 %v1008, %v1007
    %v1246 = vpack.c.bf16 %v1010, %v1009
    %v1247 = vpack.c.bf16 %v1012, %v1011
    %v1248 = vpack.c.bf16 %v1014, %v1013
    %v1249 = vpack.c.bf16 %v1016, %v1015
    %v1250 = vld [vmem:[%s2] sm:$0xf]
    %v1251 = vld [vmem:[%s2 + $0x4] sm:$0xf]
    %v1252 = vld [vmem:[%s2 + $0x8] sm:$0xf]
    %v1253 = vld [vmem:[%s2 + $0xc] sm:$0xf]
    %v1254 = vld [vmem:[%s3] sm:$0x1]
    %v1256 = vperm.slane %v1254, 0
    %v1262 = vunpack.c.l.b16 %v1250
    %v1263 = vunpack.c.l.b16 %v1251
    %v1264 = vunpack.c.l.b16 %v1252
    %v1265 = vunpack.c.l.b16 %v1253
    %v1266 = vpack.c.b16 %v1263, %v1262
    %v1267 = vpack.c.b16 %v1265, %v1264
    %vm1270 = vcmask 261120
    %v1272 = vsel %vm1270, %v1242, 0
    %v1275 = vsel %vm1270, %v1243, 0
    %v1278 = vsel %vm1270, %v1244, 0
    %v1281 = vsel %vm1270, %v1245, 0
    %v1284 = vsel %vm1270, %v1246, 0
    %v1287 = vsel %vm1270, %v1247, 0
    %v1290 = vsel %vm1270, %v1248, 0
    %v1293 = vsel %vm1270, %v1249, 0
    %1295 = vmatpush.bf16.msra.mxu0 0
    %1296 = vmatpush.bf16.msra.mxu0 0
    %1297 = vmatpush.bf16.msra.mxu0 0
    %1298 = vmatpush.bf16.msra.mxu0 0
    %1299 = vmatpush.bf16.msra.mxu0 0
    %1300 = vmatpush.bf16.msra.mxu0 0
    %1301 = vmatpush.bf16.msra.mxu0 %v1267
    %1302 = vmatpush.bf16.msra.mxu0 %v1266
    %1303 = vmatmul.bf16.gmra.mxu0 %v1272
    %v1304 = vpop.f32.mrf.mxu0
    %v1305 = vadd.f32 %v1256, %v1304
    %v1306 = vpop.f32.mrf.mxu0
    %v1307 = vadd.f32 %v1256, %v1306
    %1308 = vmatmul.bf16.gmra.mxu0 %v1275
    %v1309 = vpop.f32.mrf.mxu0
    %v1310 = vadd.f32 %v1256, %v1309
    %v1311 = vpop.f32.mrf.mxu0
    %v1312 = vadd.f32 %v1256, %v1311
    %1313 = vmatmul.bf16.gmra.mxu0 %v1278
    %v1314 = vpop.f32.mrf.mxu0
    %v1315 = vadd.f32 %v1256, %v1314
    %v1316 = vpop.f32.mrf.mxu0
    %v1317 = vadd.f32 %v1256, %v1316
    %1318 = vmatmul.bf16.gmra.mxu0 %v1281
    %v1319 = vpop.f32.mrf.mxu0
    %v1320 = vadd.f32 %v1256, %v1319
    %v1321 = vpop.f32.mrf.mxu0
    %v1322 = vadd.f32 %v1256, %v1321
    %1323 = vmatmul.bf16.gmra.mxu0 %v1284
    %v1324 = vpop.f32.mrf.mxu0
    %v1325 = vadd.f32 %v1256, %v1324
    %v1326 = vpop.f32.mrf.mxu0
    %v1327 = vadd.f32 %v1256, %v1326
    %1328 = vmatmul.bf16.gmra.mxu0 %v1287
    %v1329 = vpop.f32.mrf.mxu0
    %v1330 = vadd.f32 %v1256, %v1329
    %v1331 = vpop.f32.mrf.mxu0
    %v1332 = vadd.f32 %v1256, %v1331
    %1333 = vmatmul.bf16.gmra.mxu0 %v1290
    %v1334 = vpop.f32.mrf.mxu0
    %v1335 = vadd.f32 %v1256, %v1334
    %v1336 = vpop.f32.mrf.mxu0
    %v1337 = vadd.f32 %v1256, %v1336
    %1338 = vmatmul.bf16.gmra.mxu0 %v1293
    %v1339 = vpop.f32.mrf.mxu0
    %v1340 = vadd.f32 %v1256, %v1339
    %v1341 = vpop.f32.mrf.mxu0
    %v1342 = vadd.f32 %v1256, %v1341
    %1343 = vdwg.mxu0
    %v1344 = vmax.f32 %v1305, 0.0
    %v1345 = vmax.f32 %v1307, 0.0
    %v1346 = vmax.f32 %v1310, 0.0
    %v1347 = vmax.f32 %v1312, 0.0
    %v1348 = vmax.f32 %v1315, 0.0
    %v1349 = vmax.f32 %v1317, 0.0
    %v1350 = vmax.f32 %v1320, 0.0
    %v1351 = vmax.f32 %v1322, 0.0
    %v1352 = vmax.f32 %v1325, 0.0
    %v1353 = vmax.f32 %v1327, 0.0
    %v1354 = vmax.f32 %v1330, 0.0
    %v1355 = vmax.f32 %v1332, 0.0
    %v1356 = vmax.f32 %v1335, 0.0
    %v1357 = vmax.f32 %v1337, 0.0
    %v1358 = vmax.f32 %v1340, 0.0
    %v1359 = vmax.f32 %v1342, 0.0
    %v1360 = vpack.c.bf16 %v1345, %v1344
    %v1361 = vpack.c.bf16 %v1347, %v1346
    %v1362 = vpack.c.bf16 %v1349, %v1348
    %v1363 = vpack.c.bf16 %v1351, %v1350
    %v1364 = vpack.c.bf16 %v1353, %v1352
    %v1365 = vpack.c.bf16 %v1355, %v1354
    %v1366 = vpack.c.bf16 %v1357, %v1356
    %v1367 = vpack.c.bf16 %v1359, %v1358
    %v1368 = vld [vmem:[%s4] sm:$0xf]
    %v1369 = vld [vmem:[%s4 + $0x4] sm:$0xf]
    %v1370 = vld [vmem:[%s4 + $0x8] sm:$0xf]
    %v1371 = vld [vmem:[%s4 + $0xc] sm:$0xf]
    %v1372 = vld [vmem:[%s5] sm:$0x1]
    %v1374 = vperm.slane %v1372, 0
    %v1380 = vunpack.c.l.b16 %v1368
    %v1381 = vunpack.c.l.b16 %v1369
    %v1382 = vunpack.c.l.b16 %v1370
    %v1383 = vunpack.c.l.b16 %v1371
    %v1384 = vpack.c.b16 %v1381, %v1380
    %v1385 = vpack.c.b16 %v1383, %v1382
    %v1389 = vsel %vm1270, %v1360, 0
    %v1392 = vsel %vm1270, %v1361, 0
    %v1395 = vsel %vm1270, %v1362, 0
    %v1398 = vsel %vm1270, %v1363, 0
    %v1401 = vsel %vm1270, %v1364, 0
    %v1404 = vsel %vm1270, %v1365, 0
    %v1407 = vsel %vm1270, %v1366, 0
    %v1410 = vsel %vm1270, %v1367, 0
    %1412 = vmatpush.bf16.msra.mxu0 0
    %1413 = vmatpush.bf16.msra.mxu0 0
    %1414 = vmatpush.bf16.msra.mxu0 0
    %1415 = vmatpush.bf16.msra.mxu0 0
    %1416 = vmatpush.bf16.msra.mxu0 0
    %1417 = vmatpush.bf16.msra.mxu0 0
    %1418 = vmatpush.bf16.msra.mxu0 %v1385
    %1419 = vmatpush.bf16.msra.mxu0 %v1384
    %1420 = vmatmul.bf16.gmra.mxu0 %v1389
    %v1421 = vpop.f32.mrf.mxu0
    %v1422 = vadd.f32 %v1374, %v1421
    %v1423 = vpop.f32.mrf.mxu0
    %v1424 = vadd.f32 %v1374, %v1423
    %1425 = vmatmul.bf16.gmra.mxu0 %v1392
    %v1426 = vpop.f32.mrf.mxu0
    %v1427 = vadd.f32 %v1374, %v1426
    %v1428 = vpop.f32.mrf.mxu0
    %v1429 = vadd.f32 %v1374, %v1428
    %1430 = vmatmul.bf16.gmra.mxu0 %v1395
    %v1431 = vpop.f32.mrf.mxu0
    %v1432 = vadd.f32 %v1374, %v1431
    %v1433 = vpop.f32.mrf.mxu0
    %v1434 = vadd.f32 %v1374, %v1433
    %1435 = vmatmul.bf16.gmra.mxu0 %v1398
    %v1436 = vpop.f32.mrf.mxu0
    %v1437 = vadd.f32 %v1374, %v1436
    %v1438 = vpop.f32.mrf.mxu0
    %v1439 = vadd.f32 %v1374, %v1438
    %1440 = vmatmul.bf16.gmra.mxu0 %v1401
    %v1441 = vpop.f32.mrf.mxu0
    %v1442 = vadd.f32 %v1374, %v1441
    %v1443 = vpop.f32.mrf.mxu0
    %v1444 = vadd.f32 %v1374, %v1443
    %1445 = vmatmul.bf16.gmra.mxu0 %v1404
    %v1446 = vpop.f32.mrf.mxu0
    %v1447 = vadd.f32 %v1374, %v1446
    %v1448 = vpop.f32.mrf.mxu0
    %v1449 = vadd.f32 %v1374, %v1448
    %1450 = vmatmul.bf16.gmra.mxu0 %v1407
    %v1451 = vpop.f32.mrf.mxu0
    %v1452 = vadd.f32 %v1374, %v1451
    %v1453 = vpop.f32.mrf.mxu0
    %v1454 = vadd.f32 %v1374, %v1453
    %1455 = vmatmul.bf16.gmra.mxu0 %v1410
    %v1456 = vpop.f32.mrf.mxu0
    %v1457 = vadd.f32 %v1374, %v1456
    %v1458 = vpop.f32.mrf.mxu0
    %v1459 = vadd.f32 %v1374, %v1458
    %1460 = vdwg.mxu0
    %v1461 = vmax.f32 %v1422, 0.0
    %v1462 = vmax.f32 %v1424, 0.0
    %v1463 = vmax.f32 %v1427, 0.0
    %v1464 = vmax.f32 %v1429, 0.0
    %v1465 = vmax.f32 %v1432, 0.0
    %v1466 = vmax.f32 %v1434, 0.0
    %v1467 = vmax.f32 %v1437, 0.0
    %v1468 = vmax.f32 %v1439, 0.0
    %v1469 = vmax.f32 %v1442, 0.0
    %v1470 = vmax.f32 %v1444, 0.0
    %v1471 = vmax.f32 %v1447, 0.0
    %v1472 = vmax.f32 %v1449, 0.0
    %v1473 = vmax.f32 %v1452, 0.0
    %v1474 = vmax.f32 %v1454, 0.0
    %v1475 = vmax.f32 %v1457, 0.0
    %v1476 = vmax.f32 %v1459, 0.0
    %v1477 = vld [vmem:[%s6] sm:$0x1]
    %v1479 = vperm.slane %v1477, 0
    %v1481 = vmul.f32 %v1461, %v1479
    %v1482 = vmul.f32 %v1462, %v1479
    %v1483 = vmul.f32 %v1463, %v1479
    %v1484 = vmul.f32 %v1464, %v1479
    %v1485 = vmul.f32 %v1465, %v1479
    %v1486 = vmul.f32 %v1466, %v1479
    %v1487 = vmul.f32 %v1467, %v1479
    %v1488 = vmul.f32 %v1468, %v1479
    %v1489 = vmul.f32 %v1469, %v1479
    %v1490 = vmul.f32 %v1470, %v1479
    %v1491 = vmul.f32 %v1471, %v1479
    %v1492 = vmul.f32 %v1472, %v1479
    %v1493 = vmul.f32 %v1473, %v1479
    %v1494 = vmul.f32 %v1474, %v1479
    %v1495 = vmul.f32 %v1475, %v1479
    %v1496 = vmul.f32 %v1476, %v1479
    %v1497 = vsel %vm983, %v1481, 0.0
    %1498 = vadd.xlane.f32.xlu0 %v1497
    %v1499 = vpop.xlane.xlu0 %1498
    %v1500 = vsel %vm983, %v1482, 0.0
    %1501 = vadd.xlane.f32.xlu0 %v1500
    %v1502 = vpop.xlane.xlu0 %1501
    %v1503 = vsel %vm983, %v1483, 0.0
    %1504 = vadd.xlane.f32.xlu0 %v1503
    %v1505 = vpop.xlane.xlu0 %1504
    %v1506 = vsel %vm983, %v1484, 0.0
    %1507 = vadd.xlane.f32.xlu0 %v1506
    %v1508 = vpop.xlane.xlu0 %1507
    %v1509 = vsel %vm983, %v1485, 0.0
    %1510 = vadd.xlane.f32.xlu0 %v1509
    %v1511 = vpop.xlane.xlu0 %1510
    %v1512 = vsel %vm983, %v1486, 0.0
    %1513 = vadd.xlane.f32.xlu0 %v1512
    %v1514 = vpop.xlane.xlu0 %1513
    %v1515 = vsel %vm983, %v1487, 0.0
    %1516 = vadd.xlane.f32.xlu0 %v1515
    %v1517 = vpop.xlane.xlu0 %1516
    %v1518 = vsel %vm983, %v1488, 0.0
    %1519 = vadd.xlane.f32.xlu0 %v1518
    %v1520 = vpop.xlane.xlu0 %1519
    %v1521 = vsel %vm983, %v1489, 0.0
    %1522 = vadd.xlane.f32.xlu0 %v1521
    %v1523 = vpop.xlane.xlu0 %1522
    %v1524 = vsel %vm983, %v1490, 0.0
    %1525 = vadd.xlane.f32.xlu0 %v1524
    %v1526 = vpop.xlane.xlu0 %1525
    %v1527 = vsel %vm983, %v1491, 0.0
    %1528 = vadd.xlane.f32.xlu0 %v1527
    %v1529 = vpop.xlane.xlu0 %1528
    %v1530 = vsel %vm983, %v1492, 0.0
    %1531 = vadd.xlane.f32.xlu0 %v1530
    %v1532 = vpop.xlane.xlu0 %1531
    %v1533 = vsel %vm983, %v1493, 0.0
    %1534 = vadd.xlane.f32.xlu0 %v1533
    %v1535 = vpop.xlane.xlu0 %1534
    %v1536 = vsel %vm983, %v1494, 0.0
    %1537 = vadd.xlane.f32.xlu0 %v1536
    %v1538 = vpop.xlane.xlu0 %1537
    %v1539 = vsel %vm983, %v1495, 0.0
    %1540 = vadd.xlane.f32.xlu0 %v1539
    %v1541 = vpop.xlane.xlu0 %1540
    %v1542 = vsel %vm983, %v1496, 0.0
    %1543 = vadd.xlane.f32.xlu0 %v1542
    %v1544 = vpop.xlane.xlu0 %1543
    %v1545 = vadd.f32 %v758, %v1226
    %v1546 = vadd.f32 %v759, %v1227
    %v1547 = vadd.f32 %v760, %v1228
    %v1548 = vadd.f32 %v761, %v1229
    %v1549 = vadd.f32 %v762, %v1230
    %v1550 = vadd.f32 %v763, %v1231
    %v1551 = vadd.f32 %v764, %v1232
    %v1552 = vadd.f32 %v765, %v1233
    %v1553 = vadd.f32 %v766, %v1234
    %v1554 = vadd.f32 %v767, %v1235
    %v1555 = vadd.f32 %v768, %v1236
    %v1556 = vadd.f32 %v769, %v1237
    %v1557 = vadd.f32 %v770, %v1238
    %v1558 = vadd.f32 %v771, %v1239
    %v1559 = vadd.f32 %v772, %v1240
    %v1560 = vadd.f32 %v773, %v1241
    %v1561 = vadd.f32 %v1545, %v1499
    %v1562 = vadd.f32 %v1546, %v1502
    %v1563 = vadd.f32 %v1547, %v1505
    %v1564 = vadd.f32 %v1548, %v1508
    %v1565 = vadd.f32 %v1549, %v1511
    %v1566 = vadd.f32 %v1550, %v1514
    %v1567 = vadd.f32 %v1551, %v1517
    %v1568 = vadd.f32 %v1552, %v1520
    %v1569 = vadd.f32 %v1553, %v1523
    %v1570 = vadd.f32 %v1554, %v1526
    %v1571 = vadd.f32 %v1555, %v1529
    %v1572 = vadd.f32 %v1556, %v1532
    %v1573 = vadd.f32 %v1557, %v1535
    %v1574 = vadd.f32 %v1558, %v1538
    %v1575 = vadd.f32 %v1559, %v1541
    %v1576 = vadd.f32 %v1560, %v1544
    %v1577 = vstv %s1017
    %v1578 = vadd.f32 %v1561, %v1577
    %v1579 = vadd.f32 %v1562, %v1577
    %v1580 = vadd.f32 %v1563, %v1577
    %v1581 = vadd.f32 %v1564, %v1577
    %v1582 = vadd.f32 %v1565, %v1577
    %v1583 = vadd.f32 %v1566, %v1577
    %v1584 = vadd.f32 %v1567, %v1577
    %v1585 = vadd.f32 %v1568, %v1577
    %v1586 = vadd.f32 %v1569, %v1577
    %v1587 = vadd.f32 %v1570, %v1577
    %v1588 = vadd.f32 %v1571, %v1577
    %v1589 = vadd.f32 %v1572, %v1577
    %v1590 = vadd.f32 %v1573, %v1577
    %v1591 = vadd.f32 %v1574, %v1577
    %v1592 = vadd.f32 %v1575, %v1577
    %v1593 = vadd.f32 %v1576, %v1577
    %v1594 = vxor.u32 %v1578, 2147483648
    %v1595 = vxor.u32 %v1579, 2147483648
    %v1596 = vxor.u32 %v1580, 2147483648
    %v1597 = vxor.u32 %v1581, 2147483648
    %v1598 = vxor.u32 %v1582, 2147483648
    %v1599 = vxor.u32 %v1583, 2147483648
    %v1600 = vxor.u32 %v1584, 2147483648
    %v1601 = vxor.u32 %v1585, 2147483648
    %v1602 = vxor.u32 %v1586, 2147483648
    %v1603 = vxor.u32 %v1587, 2147483648
    %v1604 = vxor.u32 %v1588, 2147483648
    %v1605 = vxor.u32 %v1589, 2147483648
    %v1606 = vxor.u32 %v1590, 2147483648
    %v1607 = vxor.u32 %v1591, 2147483648
    %v1608 = vxor.u32 %v1592, 2147483648
    %v1609 = vxor.u32 %v1593, 2147483648
    %v1610 = vmul.f32 %v1594, 1.442695
    %v1611 = vpow.pop %v1610
    %v1612 = vmul.f32 %v1595, 1.442695
    %v1613 = vpow.pop %v1612
    %v1614 = vmul.f32 %v1596, 1.442695
    %v1615 = vpow.pop %v1614
    %v1616 = vmul.f32 %v1597, 1.442695
    %v1617 = vpow.pop %v1616
    %v1618 = vmul.f32 %v1598, 1.442695
    %v1619 = vpow.pop %v1618
    %v1620 = vmul.f32 %v1599, 1.442695
    %v1621 = vpow.pop %v1620
    %v1622 = vmul.f32 %v1600, 1.442695
    %v1623 = vpow.pop %v1622
    %v1624 = vmul.f32 %v1601, 1.442695
    %v1625 = vpow.pop %v1624
    %v1626 = vmul.f32 %v1602, 1.442695
    %v1627 = vpow.pop %v1626
    %v1628 = vmul.f32 %v1603, 1.442695
    %v1629 = vpow.pop %v1628
    %v1630 = vmul.f32 %v1604, 1.442695
    %v1631 = vpow.pop %v1630
    %v1632 = vmul.f32 %v1605, 1.442695
    %v1633 = vpow.pop %v1632
    %v1634 = vmul.f32 %v1606, 1.442695
    %v1635 = vpow.pop %v1634
    %v1636 = vmul.f32 %v1607, 1.442695
    %v1637 = vpow.pop %v1636
    %v1638 = vmul.f32 %v1608, 1.442695
    %v1639 = vpow.pop %v1638
    %v1640 = vmul.f32 %v1609, 1.442695
    %v1641 = vpow.pop %v1640
    %v1642 = vadd.f32 %v1611, 1.0
    %v1643 = vadd.f32 %v1613, 1.0
    %v1644 = vadd.f32 %v1615, 1.0
    %v1645 = vadd.f32 %v1617, 1.0
    %v1646 = vadd.f32 %v1619, 1.0
    %v1647 = vadd.f32 %v1621, 1.0
    %v1648 = vadd.f32 %v1623, 1.0
    %v1649 = vadd.f32 %v1625, 1.0
    %v1650 = vadd.f32 %v1627, 1.0
    %v1651 = vadd.f32 %v1629, 1.0
    %v1652 = vadd.f32 %v1631, 1.0
    %v1653 = vadd.f32 %v1633, 1.0
    %v1654 = vadd.f32 %v1635, 1.0
    %v1655 = vadd.f32 %v1637, 1.0
    %v1656 = vadd.f32 %v1639, 1.0
    %v1657 = vadd.f32 %v1641, 1.0
    %v1658 = vrcp.pop %v1642
    %v1659 = vmul.f32 %v1642, %v1658
    %v1660 = vsub.f32 1.0, %v1659
    %v1661 = vmul.f32 %v1658, %v1660
    %v1662 = vadd.f32 %v1658, %v1661
    %vm1663 = vweird.f32 %v1642
    %vm1664 = vweird.f32 %v1658
    %vm1665 = vmor %vm1663, %vm1664
    %v1666 = vsel %vm1665, %v1658, %v1662
    %v1667 = vand.u32 2147483647, %v1642
    %vm1668 = vcmp.eq.f32.partialorder %v1667, 8.507059e+37
    %v1669 = vand.u32 %v1642, 2147483648
    %v1670 = vor.u32 1.1754944e-38, %v1669
    %v1671 = vsel %vm1668, %v1670, %v1666
    %v1672 = vmul.f32 1.0, %v1671
    %v1673 = vrcp.pop %v1643
    %v1674 = vmul.f32 %v1643, %v1673
    %v1675 = vsub.f32 1.0, %v1674
    %v1676 = vmul.f32 %v1673, %v1675
    %v1677 = vadd.f32 %v1673, %v1676
    %vm1678 = vweird.f32 %v1643
    %vm1679 = vweird.f32 %v1673
    %vm1680 = vmor %vm1678, %vm1679
    %v1681 = vsel %vm1680, %v1673, %v1677
    %v1682 = vand.u32 2147483647, %v1643
    %vm1683 = vcmp.eq.f32.partialorder %v1682, 8.507059e+37
    %v1684 = vand.u32 %v1643, 2147483648
    %v1685 = vor.u32 1.1754944e-38, %v1684
    %v1686 = vsel %vm1683, %v1685, %v1681
    %v1687 = vmul.f32 1.0, %v1686
    %v1688 = vrcp.pop %v1644
    %v1689 = vmul.f32 %v1644, %v1688
    %v1690 = vsub.f32 1.0, %v1689
    %v1691 = vmul.f32 %v1688, %v1690
    %v1692 = vadd.f32 %v1688, %v1691
    %vm1693 = vweird.f32 %v1644
    %vm1694 = vweird.f32 %v1688
    %vm1695 = vmor %vm1693, %vm1694
    %v1696 = vsel %vm1695, %v1688, %v1692
    %v1697 = vand.u32 2147483647, %v1644
    %vm1698 = vcmp.eq.f32.partialorder %v1697, 8.507059e+37
    %v1699 = vand.u32 %v1644, 2147483648
    %v1700 = vor.u32 1.1754944e-38, %v1699
    %v1701 = vsel %vm1698, %v1700, %v1696
    %v1702 = vmul.f32 1.0, %v1701
    %v1703 = vrcp.pop %v1645
    %v1704 = vmul.f32 %v1645, %v1703
    %v1705 = vsub.f32 1.0, %v1704
    %v1706 = vmul.f32 %v1703, %v1705
    %v1707 = vadd.f32 %v1703, %v1706
    %vm1708 = vweird.f32 %v1645
    %vm1709 = vweird.f32 %v1703
    %vm1710 = vmor %vm1708, %vm1709
    %v1711 = vsel %vm1710, %v1703, %v1707
    %v1712 = vand.u32 2147483647, %v1645
    %vm1713 = vcmp.eq.f32.partialorder %v1712, 8.507059e+37
    %v1714 = vand.u32 %v1645, 2147483648
    %v1715 = vor.u32 1.1754944e-38, %v1714
    %v1716 = vsel %vm1713, %v1715, %v1711
    %v1717 = vmul.f32 1.0, %v1716
    %v1718 = vrcp.pop %v1646
    %v1719 = vmul.f32 %v1646, %v1718
    %v1720 = vsub.f32 1.0, %v1719
    %v1721 = vmul.f32 %v1718, %v1720
    %v1722 = vadd.f32 %v1718, %v1721
    %vm1723 = vweird.f32 %v1646
    %vm1724 = vweird.f32 %v1718
    %vm1725 = vmor %vm1723, %vm1724
    %v1726 = vsel %vm1725, %v1718, %v1722
    %v1727 = vand.u32 2147483647, %v1646
    %vm1728 = vcmp.eq.f32.partialorder %v1727, 8.507059e+37
    %v1729 = vand.u32 %v1646, 2147483648
    %v1730 = vor.u32 1.1754944e-38, %v1729
    %v1731 = vsel %vm1728, %v1730, %v1726
    %v1732 = vmul.f32 1.0, %v1731
    %v1733 = vrcp.pop %v1647
    %v1734 = vmul.f32 %v1647, %v1733
    %v1735 = vsub.f32 1.0, %v1734
    %v1736 = vmul.f32 %v1733, %v1735
    %v1737 = vadd.f32 %v1733, %v1736
    %vm1738 = vweird.f32 %v1647
    %vm1739 = vweird.f32 %v1733
    %vm1740 = vmor %vm1738, %vm1739
    %v1741 = vsel %vm1740, %v1733, %v1737
    %v1742 = vand.u32 2147483647, %v1647
    %vm1743 = vcmp.eq.f32.partialorder %v1742, 8.507059e+37
    %v1744 = vand.u32 %v1647, 2147483648
    %v1745 = vor.u32 1.1754944e-38, %v1744
    %v1746 = vsel %vm1743, %v1745, %v1741
    %v1747 = vmul.f32 1.0, %v1746
    %v1748 = vrcp.pop %v1648
    %v1749 = vmul.f32 %v1648, %v1748
    %v1750 = vsub.f32 1.0, %v1749
    %v1751 = vmul.f32 %v1748, %v1750
    %v1752 = vadd.f32 %v1748, %v1751
    %vm1753 = vweird.f32 %v1648
    %vm1754 = vweird.f32 %v1748
    %vm1755 = vmor %vm1753, %vm1754
    %v1756 = vsel %vm1755, %v1748, %v1752
    %v1757 = vand.u32 2147483647, %v1648
    %vm1758 = vcmp.eq.f32.partialorder %v1757, 8.507059e+37
    %v1759 = vand.u32 %v1648, 2147483648
    %v1760 = vor.u32 1.1754944e-38, %v1759
    %v1761 = vsel %vm1758, %v1760, %v1756
    %v1762 = vmul.f32 1.0, %v1761
    %v1763 = vrcp.pop %v1649
    %v1764 = vmul.f32 %v1649, %v1763
    %v1765 = vsub.f32 1.0, %v1764
    %v1766 = vmul.f32 %v1763, %v1765
    %v1767 = vadd.f32 %v1763, %v1766
    %vm1768 = vweird.f32 %v1649
    %vm1769 = vweird.f32 %v1763
    %vm1770 = vmor %vm1768, %vm1769
    %v1771 = vsel %vm1770, %v1763, %v1767
    %v1772 = vand.u32 2147483647, %v1649
    %vm1773 = vcmp.eq.f32.partialorder %v1772, 8.507059e+37
    %v1774 = vand.u32 %v1649, 2147483648
    %v1775 = vor.u32 1.1754944e-38, %v1774
    %v1776 = vsel %vm1773, %v1775, %v1771
    %v1777 = vmul.f32 1.0, %v1776
    %v1778 = vrcp.pop %v1650
    %v1779 = vmul.f32 %v1650, %v1778
    %v1780 = vsub.f32 1.0, %v1779
    %v1781 = vmul.f32 %v1778, %v1780
    %v1782 = vadd.f32 %v1778, %v1781
    %vm1783 = vweird.f32 %v1650
    %vm1784 = vweird.f32 %v1778
    %vm1785 = vmor %vm1783, %vm1784
    %v1786 = vsel %vm1785, %v1778, %v1782
    %v1787 = vand.u32 2147483647, %v1650
    %vm1788 = vcmp.eq.f32.partialorder %v1787, 8.507059e+37
    %v1789 = vand.u32 %v1650, 2147483648
    %v1790 = vor.u32 1.1754944e-38, %v1789
    %v1791 = vsel %vm1788, %v1790, %v1786
    %v1792 = vmul.f32 1.0, %v1791
    %v1793 = vrcp.pop %v1651
    %v1794 = vmul.f32 %v1651, %v1793
    %v1795 = vsub.f32 1.0, %v1794
    %v1796 = vmul.f32 %v1793, %v1795
    %v1797 = vadd.f32 %v1793, %v1796
    %vm1798 = vweird.f32 %v1651
    %vm1799 = vweird.f32 %v1793
    %vm1800 = vmor %vm1798, %vm1799
    %v1801 = vsel %vm1800, %v1793, %v1797
    %v1802 = vand.u32 2147483647, %v1651
    %vm1803 = vcmp.eq.f32.partialorder %v1802, 8.507059e+37
    %v1804 = vand.u32 %v1651, 2147483648
    %v1805 = vor.u32 1.1754944e-38, %v1804
    %v1806 = vsel %vm1803, %v1805, %v1801
    %v1807 = vmul.f32 1.0, %v1806
    %v1808 = vrcp.pop %v1652
    %v1809 = vmul.f32 %v1652, %v1808
    %v1810 = vsub.f32 1.0, %v1809
    %v1811 = vmul.f32 %v1808, %v1810
    %v1812 = vadd.f32 %v1808, %v1811
    %vm1813 = vweird.f32 %v1652
    %vm1814 = vweird.f32 %v1808
    %vm1815 = vmor %vm1813, %vm1814
    %v1816 = vsel %vm1815, %v1808, %v1812
    %v1817 = vand.u32 2147483647, %v1652
    %vm1818 = vcmp.eq.f32.partialorder %v1817, 8.507059e+37
    %v1819 = vand.u32 %v1652, 2147483648
    %v1820 = vor.u32 1.1754944e-38, %v1819
    %v1821 = vsel %vm1818, %v1820, %v1816
    %v1822 = vmul.f32 1.0, %v1821
    %v1823 = vrcp.pop %v1653
    %v1824 = vmul.f32 %v1653, %v1823
    %v1825 = vsub.f32 1.0, %v1824
    %v1826 = vmul.f32 %v1823, %v1825
    %v1827 = vadd.f32 %v1823, %v1826
    %vm1828 = vweird.f32 %v1653
    %vm1829 = vweird.f32 %v1823
    %vm1830 = vmor %vm1828, %vm1829
    %v1831 = vsel %vm1830, %v1823, %v1827
    %v1832 = vand.u32 2147483647, %v1653
    %vm1833 = vcmp.eq.f32.partialorder %v1832, 8.507059e+37
    %v1834 = vand.u32 %v1653, 2147483648
    %v1835 = vor.u32 1.1754944e-38, %v1834
    %v1836 = vsel %vm1833, %v1835, %v1831
    %v1837 = vmul.f32 1.0, %v1836
    %v1838 = vrcp.pop %v1654
    %v1839 = vmul.f32 %v1654, %v1838
    %v1840 = vsub.f32 1.0, %v1839
    %v1841 = vmul.f32 %v1838, %v1840
    %v1842 = vadd.f32 %v1838, %v1841
    %vm1843 = vweird.f32 %v1654
    %vm1844 = vweird.f32 %v1838
    %vm1845 = vmor %vm1843, %vm1844
    %v1846 = vsel %vm1845, %v1838, %v1842
    %v1847 = vand.u32 2147483647, %v1654
    %vm1848 = vcmp.eq.f32.partialorder %v1847, 8.507059e+37
    %v1849 = vand.u32 %v1654, 2147483648
    %v1850 = vor.u32 1.1754944e-38, %v1849
    %v1851 = vsel %vm1848, %v1850, %v1846
    %v1852 = vmul.f32 1.0, %v1851
    %v1853 = vrcp.pop %v1655
    %v1854 = vmul.f32 %v1655, %v1853
    %v1855 = vsub.f32 1.0, %v1854
    %v1856 = vmul.f32 %v1853, %v1855
    %v1857 = vadd.f32 %v1853, %v1856
    %vm1858 = vweird.f32 %v1655
    %vm1859 = vweird.f32 %v1853
    %vm1860 = vmor %vm1858, %vm1859
    %v1861 = vsel %vm1860, %v1853, %v1857
    %v1862 = vand.u32 2147483647, %v1655
    %vm1863 = vcmp.eq.f32.partialorder %v1862, 8.507059e+37
    %v1864 = vand.u32 %v1655, 2147483648
    %v1865 = vor.u32 1.1754944e-38, %v1864
    %v1866 = vsel %vm1863, %v1865, %v1861
    %v1867 = vmul.f32 1.0, %v1866
    %v1868 = vrcp.pop %v1656
    %v1869 = vmul.f32 %v1656, %v1868
    %v1870 = vsub.f32 1.0, %v1869
    %v1871 = vmul.f32 %v1868, %v1870
    %v1872 = vadd.f32 %v1868, %v1871
    %vm1873 = vweird.f32 %v1656
    %vm1874 = vweird.f32 %v1868
    %vm1875 = vmor %vm1873, %vm1874
    %v1876 = vsel %vm1875, %v1868, %v1872
    %v1877 = vand.u32 2147483647, %v1656
    %vm1878 = vcmp.eq.f32.partialorder %v1877, 8.507059e+37
    %v1879 = vand.u32 %v1656, 2147483648
    %v1880 = vor.u32 1.1754944e-38, %v1879
    %v1881 = vsel %vm1878, %v1880, %v1876
    %v1882 = vmul.f32 1.0, %v1881
    %v1883 = vrcp.pop %v1657
    %v1884 = vmul.f32 %v1657, %v1883
    %v1885 = vsub.f32 1.0, %v1884
    %v1886 = vmul.f32 %v1883, %v1885
    %v1887 = vadd.f32 %v1883, %v1886
    %vm1888 = vweird.f32 %v1657
    %vm1889 = vweird.f32 %v1883
    %vm1890 = vmor %vm1888, %vm1889
    %v1891 = vsel %vm1890, %v1883, %v1887
    %v1892 = vand.u32 2147483647, %v1657
    %vm1893 = vcmp.eq.f32.partialorder %v1892, 8.507059e+37
    %v1894 = vand.u32 %v1657, 2147483648
    %v1895 = vor.u32 1.1754944e-38, %v1894
    %v1896 = vsel %vm1893, %v1895, %v1891
    %v1897 = vmul.f32 1.0, %v1896
    %1914 = vrot.lane.b32.xlu0 %v1672, 120
    %v1915 = vpop.permute.xlu0 %1914
    %1916 = vrot.lane.b32.xlu0 %v1687, 120
    %v1917 = vpop.permute.xlu0 %1916
    %1918 = vrot.lane.b32.xlu0 %v1702, 120
    %v1919 = vpop.permute.xlu0 %1918
    %1920 = vrot.lane.b32.xlu0 %v1717, 120
    %v1921 = vpop.permute.xlu0 %1920
    %1922 = vrot.lane.b32.xlu0 %v1732, 120
    %v1923 = vpop.permute.xlu0 %1922
    %1924 = vrot.lane.b32.xlu0 %v1747, 120
    %v1925 = vpop.permute.xlu0 %1924
    %1926 = vrot.lane.b32.xlu0 %v1762, 120
    %v1927 = vpop.permute.xlu0 %1926
    %1928 = vrot.lane.b32.xlu0 %v1777, 120
    %v1929 = vpop.permute.xlu0 %1928
    %1930 = vrot.lane.b32.xlu0 %v1792, 120
    %v1931 = vpop.permute.xlu0 %1930
    %1932 = vrot.lane.b32.xlu0 %v1807, 120
    %v1933 = vpop.permute.xlu0 %1932
    %1934 = vrot.lane.b32.xlu0 %v1822, 120
    %v1935 = vpop.permute.xlu0 %1934
    %1936 = vrot.lane.b32.xlu0 %v1837, 120
    %v1937 = vpop.permute.xlu0 %1936
    %1938 = vrot.lane.b32.xlu0 %v1852, 120
    %v1939 = vpop.permute.xlu0 %1938
    %1940 = vrot.lane.b32.xlu0 %v1867, 120
    %v1941 = vpop.permute.xlu0 %1940
    %1942 = vrot.lane.b32.xlu0 %v1882, 120
    %v1943 = vpop.permute.xlu0 %1942
    %1944 = vrot.lane.b32.xlu0 %v1897, 120
    %v1945 = vpop.permute.xlu0 %1944
    %1962 = vxpose.xlu0.b32.start [1/16] %v1915, 128
    %1963 = vxpose.xlu0.b32.cont [2/16] %v1917, 128
    %1964 = vxpose.xlu0.b32.cont [3/16] %v1919, 128
    %1965 = vxpose.xlu0.b32.cont [4/16] %v1921, 128
    %1966 = vxpose.xlu0.b32.cont [5/16] %v1923, 128
    %1967 = vxpose.xlu0.b32.cont [6/16] %v1925, 128
    %1968 = vxpose.xlu0.b32.cont [7/16] %v1927, 128
    %1969 = vxpose.xlu0.b32.cont [8/16] %v1929, 128
    %1970 = vxpose.xlu0.b32.cont [9/16] %v1931, 128
    %1971 = vxpose.xlu0.b32.cont [10/16] %v1933, 128
    %1972 = vxpose.xlu0.b32.cont [11/16] %v1935, 128
    %1973 = vxpose.xlu0.b32.cont [12/16] %v1937, 128
    %1974 = vxpose.xlu0.b32.cont [13/16] %v1939, 128
    %1975 = vxpose.xlu0.b32.cont [14/16] %v1941, 128
    %1976 = vxpose.xlu0.b32.cont [15/16] %v1943, 128
    %1977 = vxpose.xlu0.b32.end [16/16] %v1945, 128
    %v1978 = vpop.trf.xlu0
    %v1979 = vpop.trf.xlu0
    %v1980 = vpop.trf.xlu0
    %v1981 = vpop.trf.xlu0
    %v1982 = vpop.trf.xlu0
    %v1983 = vpop.trf.xlu0
    %v1984 = vpop.trf.xlu0
    %v1985 = vpop.trf.xlu0
    %v1986 = vpop.trf.xlu0
    %v1987 = vpop.trf.xlu0
    %v1988 = vpop.trf.xlu0
    %v1989 = vpop.trf.xlu0
    %v1990 = vpop.trf.xlu0
    %v1991 = vpop.trf.xlu0
    %v1992 = vpop.trf.xlu0
    %v1993 = vpop.trf.xlu0
    %1994 = vst [vmem:[#allocation3] sm:$0x1] %v1978
    // Predicated region
    $region34: #{tpu_custom_call.1} parent=1 // pred_check
      _
    $region35: #{tpu_custom_call.1} parent=1 // pred_check_branch
      %1996 = sbr.rel (0) target = $region37
    $region36: #{tpu_custom_call.1} parent=1 // pred_region
      %1998 = vsyncadd [#allocation4], 0
      %s2000 = sshll.u32 [#allocation3], 4
      %s2001 = int_to_ptr.vmem [resolvable:$true] %s2000
      %s2002 = sshll.u32 %s8, 4
      %s2003 = int_to_ptr.hbm [resolvable:$true] %s2002
      %2005 = dma.vmem_to_hbm [thread:$0]  %s2001, 16, %s2003, [#allocation4]
    $region37: #{tpu_custom_call.1} parent=1 // pred_fallthru
      _
    // Predicated region
    $region38: #{tpu_custom_call.1} parent=1 // pred_check
      _
    $region39: #{tpu_custom_call.1} parent=1 // pred_check_branch
      %2007 = sbr.rel (0) target = $region41
    $region40: #{tpu_custom_call.1} parent=1 // pred_region
      %2009 = dma.done [#allocation4], 16
    $region41: #{tpu_custom_call.1} parent=1 // pred_fallthru
      _
    %2010 = vsyncpa [#allocation4], 1

</llo_original>
